<compile_context>
chip_gen: v7x
topology: tpu7x:2x2x1
jax: 0.10.0
libtpu: 0.0.40
codegen_flags: <defaults>
</compile_context>

<pallas_src>
import jax
import jax.numpy as jnp
import numpy as np
from jax.experimental import pallas as pl
from jax.experimental.pallas import tpu as pltpu


def _make_dpcnn_kernel(B, L, E, NF, C):
    f32 = jnp.float32

    def kernel(emb_ref, wr_ref, br_ref, wc_ref, bc_ref, wfc_ref, bfc_ref,
               out_ref, pbuf):
        wr_cat = wr_ref[...]                       # [3E, F] stacked conv_region taps
        wc_cat = wc_ref[...]                       # [3F, F] stacked conv taps
        br = br_ref[...]                           # [1, F]
        bc = bc_ref[...]                           # [1, F]
        wfc = wfc_ref[...]                         # [F, C]
        bfc = bfc_ref[...]                         # [1, C]
        zrow = jnp.zeros((1, NF), f32)             # hoisted zero pad row

        def relu(x):
            return jnp.maximum(x, 0.0)

        def valid_conv(x, w_cat, b):
            # kernel-size-3 "valid" conv along rows == one MXU matmul on the
            # depth-3 im2col (lane concat of the three shifted windows).
            ho = x.shape[0] - 2
            win = jnp.concatenate(
                [x[0:ho, :], x[1:ho + 1, :], x[2:ho + 2, :]], axis=1)
            return jnp.dot(win, w_cat, preferred_element_type=f32) + b

        def same_conv(x, w_cat, b):
            # padding1 (1 zero row top + bottom) folded into the conv.
            xp = jnp.concatenate([zrow, x, zrow], axis=0)
            return valid_conv(xp, w_cat, b)

        def pool(x):
            # padding2 (1 zero row at bottom) + MaxPool2d((3,1), stride=2):
            # stage the padded tile in VMEM scratch, read three stride-2 row
            # slices, take two full-tile maxima.
            h = x.shape[0]
            ho = (h - 2) // 2 + 1                  # == ((h + 1) - 3) // 2 + 1
            pbuf[0:h, :] = x
            pbuf[h:h + 1, :] = zrow
            r0 = pbuf[pl.ds(0, ho, stride=2)]
            r1 = pbuf[pl.ds(1, ho, stride=2)]
            r2 = pbuf[pl.ds(2, ho, stride=2)]
            return jnp.maximum(jnp.maximum(r0, r1), r2)

        feats = []
        for b in range(B):                          # tiny static batch, unrolled
            x = valid_conv(emb_ref[b], wr_cat, br)  # conv_region -> [L-2, F]
            x = same_conv(relu(x), wc_cat, bc)      # padding1 + ReLU + conv
            x = same_conv(relu(x), wc_cat, bc)      # padding1 + ReLU + conv
            while x.shape[0] >= 2:                  # static trip count, unrolled
                px = pool(x)                        # padding2 + max_pool
                y = same_conv(relu(px), wc_cat, bc)
                y = same_conv(relu(y), wc_cat, bc)
                x = y + px                          # residual
            feats.append(x[0:1, :])                 # H == 1 -> [1, F]
        feat = jnp.concatenate(feats, axis=0)       # [B, F]
        out_ref[...] = jnp.dot(feat, wfc, preferred_element_type=f32) + bfc

    return kernel


@jax.jit
def dpcnn_forward(emb, wr, br, wc, bc, wfc, bfc):
    B, L, E = emb.shape
    NF = wr.shape[2]
    C = wfc.shape[1]
    wr_cat = wr.reshape(3 * E, NF)                  # stack the 3 taps along K
    wc_cat = wc.reshape(3 * NF, NF)
    vmem = pltpu.MemorySpace.VMEM
    return pl.pallas_call(
        _make_dpcnn_kernel(B, L, E, NF, C),
        out_shape=jax.ShapeDtypeStruct((B, C), jnp.float32),
        in_specs=[pl.BlockSpec(memory_space=vmem)] * 7,
        out_specs=pl.BlockSpec(memory_space=vmem),
        scratch_shapes=[pltpu.VMEM((L, NF), jnp.float32)],  # max-pool staging
    )(emb, wr_cat, br, wc_cat, bc, wfc, bfc)


def ref_forward(emb, wr, br, wc, bc, wfc, bfc):
    # Pure-JAX reference with identical semantics (for correctness check).
    def conv3(x, w, b):
        ho = x.shape[1] - 2
        out = sum(jnp.einsum("bhc,cd->bhd", x[:, k:k + ho, :], w[k]) for k in range(3))
        return out + b[None]

    def pad_h(x, top, bot):
        return jnp.pad(x, ((0, 0), (top, bot), (0, 0)))

    def max_pool(x):
        h = x.shape[1]
        ho = (h - 3) // 2 + 1
        return jnp.concatenate(
            [jnp.max(x[:, 2 * j:2 * j + 3, :], axis=1, keepdims=True) for j in range(ho)],
            axis=1,
        )

    x = conv3(emb, wr, br)
    x = jax.nn.relu(pad_h(x, 1, 1))
    x = conv3(x, wc, bc)
    x = jax.nn.relu(pad_h(x, 1, 1))
    x = conv3(x, wc, bc)
    while x.shape[1] >= 2:
        px = max_pool(pad_h(x, 0, 1))
        y = conv3(jax.nn.relu(pad_h(px, 1, 1)), wc, bc)
        y = conv3(jax.nn.relu(pad_h(y, 1, 1)), wc, bc)
        x = y + px
    return jnp.einsum("bf,fc->bc", x[:, 0, :], wfc) + bfc


if __name__ == "__main__":
    key = jax.random.PRNGKey(0)
    k_emb, k_tok, k_wr, k_br, k_wc, k_bc, k_fc, k_bf = jax.random.split(key, 8)

    VOCAB, E, NF, C, B, L = 50, 32, 8, 4, 2, 16  # vocab, embedding, num_filters, classes, batch, seq

    # Deterministic synthetic parameters (module __init__ shapes).
    emb_table = 0.1 * jax.random.normal(k_emb, (VOCAB, E), jnp.float32)
    emb_table = emb_table.at[VOCAB - 1].set(0.0)                      # padding_idx row
    tokens = jax.random.randint(k_tok, (B, L), 0, VOCAB, dtype=jnp.int32)

    wr = jax.random.normal(k_wr, (3, E, NF), jnp.float32) / np.sqrt(3 * E)    # conv_region (3,E)
    br = 0.01 * jax.random.normal(k_br, (1, NF), jnp.float32)
    wc = jax.random.normal(k_wc, (3, NF, NF), jnp.float32) / np.sqrt(3 * NF)  # conv (3,1)
    bc = 0.01 * jax.random.normal(k_bc, (1, NF), jnp.float32)
    wfc = jax.random.normal(k_fc, (NF, C), jnp.float32) / np.sqrt(NF)         # fc
    bfc = 0.01 * jax.random.normal(k_bf, (1, C), jnp.float32)

    # Embedding gather kept as plain-JAX glue (table lookup, not the hot path).
    emb = jnp.take(emb_table, tokens, axis=0)                          # [B, L, E]

    out = dpcnn_forward(emb, wr, br, wc, bc, wfc, bfc)
    out = jax.block_until_ready(out)

    ref = ref_forward(emb, wr, br, wc, bc, wfc, bfc)
    np.testing.assert_allclose(np.asarray(out), np.asarray(ref), rtol=2e-3, atol=2e-3)

    print("KERNEL_OK")
</pallas_src>

<mosaic_0001>
module attributes {stable_mosaic.version = 11 : i64} {
  func.func @kernel(%arg0: memref<2x16x32xf32, #tpu.memory_space<vmem>>, %arg1: memref<96x8xf32, #tpu.memory_space<vmem>>, %arg2: memref<1x8xf32, #tpu.memory_space<vmem>>, %arg3: memref<24x8xf32, #tpu.memory_space<vmem>>, %arg4: memref<1x8xf32, #tpu.memory_space<vmem>>, %arg5: memref<8x4xf32, #tpu.memory_space<vmem>>, %arg6: memref<1x4xf32, #tpu.memory_space<vmem>>, %arg7: memref<2x4xf32, #tpu.memory_space<vmem>>, %arg8: memref<16x8xf32, #tpu.memory_space<vmem>>) attributes {dimension_semantics = [], scalar_prefetch = 0 : i64, scratch_operands = 1 : i64, tpu.core_type = #tpu.core_type<tc>} {
    %c0 = arith.constant 0 : index
    %c0_0 = arith.constant 0 : index
    %0 = vector.load %arg1[%c0, %c0_0] : memref<96x8xf32, #tpu.memory_space<vmem>>, vector<96x8xf32>
    %c0_1 = arith.constant 0 : index
    %c0_2 = arith.constant 0 : index
    %1 = vector.load %arg3[%c0_1, %c0_2] : memref<24x8xf32, #tpu.memory_space<vmem>>, vector<24x8xf32>
    %c0_3 = arith.constant 0 : index
    %c0_4 = arith.constant 0 : index
    %2 = vector.load %arg2[%c0_3, %c0_4] : memref<1x8xf32, #tpu.memory_space<vmem>>, vector<1x8xf32>
    %c0_5 = arith.constant 0 : index
    %c0_6 = arith.constant 0 : index
    %3 = vector.load %arg4[%c0_5, %c0_6] : memref<1x8xf32, #tpu.memory_space<vmem>>, vector<1x8xf32>
    %c0_7 = arith.constant 0 : index
    %c0_8 = arith.constant 0 : index
    %4 = vector.load %arg5[%c0_7, %c0_8] : memref<8x4xf32, #tpu.memory_space<vmem>>, vector<8x4xf32>
    %c0_9 = arith.constant 0 : index
    %c0_10 = arith.constant 0 : index
    %5 = vector.load %arg6[%c0_9, %c0_10] : memref<1x4xf32, #tpu.memory_space<vmem>>, vector<1x4xf32>
    %cst = arith.constant 0.000000e+00 : f32
    %6 = vector.broadcast %cst : f32 to vector<1x8xf32>
    %c0_11 = arith.constant 0 : index
    %c0_12 = arith.constant 0 : index
    %c0_13 = arith.constant 0 : index
    %7 = vector.load %arg0[%c0_11, %c0_12, %c0_13] : memref<2x16x32xf32, #tpu.memory_space<vmem>>, vector<1x16x32xf32>
    %8 = vector.shape_cast %7 : vector<1x16x32xf32> to vector<16x32xf32>
    %9 = vector.extract_strided_slice %8 {offsets = [0, 0], sizes = [14, 32], strides = [1, 1]} : vector<16x32xf32> to vector<14x32xf32>
    %10 = vector.extract_strided_slice %8 {offsets = [1, 0], sizes = [14, 32], strides = [1, 1]} : vector<16x32xf32> to vector<14x32xf32>
    %11 = vector.extract_strided_slice %8 {offsets = [2, 0], sizes = [14, 32], strides = [1, 1]} : vector<16x32xf32> to vector<14x32xf32>
    %12 = tpu.concatenate %9, %10, %11 in 1 : vector<14x32xf32>, vector<14x32xf32>, vector<14x32xf32> -> vector<14x96xf32>
    %cst_14 = arith.constant dense<0.000000e+00> : vector<14x8xf32>
    %13 = tpu.matmul %12, %0, %cst_14 {dimension_numbers = #tpu.dot_dimension_numbers<[1], [0], [0], [1], [0, 0, 1, 1], [], []>} : vector<14x96xf32>, vector<96x8xf32>, vector<14x8xf32> -> vector<14x8xf32>
    %14 = vector.broadcast %2 : vector<1x8xf32> to vector<14x8xf32>
    %15 = arith.addf %13, %14 : vector<14x8xf32>
    %cst_15 = arith.constant 0.000000e+00 : f32
    %16 = vector.broadcast %cst_15 : f32 to vector<14x8xf32>
    %17 = arith.maximumf %15, %16 : vector<14x8xf32>
    %18 = tpu.concatenate %6, %17, %6 in 0 : vector<1x8xf32>, vector<14x8xf32>, vector<1x8xf32> -> vector<16x8xf32>
    %19 = vector.extract_strided_slice %18 {offsets = [0, 0], sizes = [14, 8], strides = [1, 1]} : vector<16x8xf32> to vector<14x8xf32>
    %20 = vector.extract_strided_slice %18 {offsets = [1, 0], sizes = [14, 8], strides = [1, 1]} : vector<16x8xf32> to vector<14x8xf32>
    %21 = vector.extract_strided_slice %18 {offsets = [2, 0], sizes = [14, 8], strides = [1, 1]} : vector<16x8xf32> to vector<14x8xf32>
    %22 = tpu.concatenate %19, %20, %21 in 1 : vector<14x8xf32>, vector<14x8xf32>, vector<14x8xf32> -> vector<14x24xf32>
    %cst_16 = arith.constant dense<0.000000e+00> : vector<14x8xf32>
    %23 = tpu.matmul %22, %1, %cst_16 {dimension_numbers = #tpu.dot_dimension_numbers<[1], [0], [0], [1], [0, 0, 1, 1], [], []>} : vector<14x24xf32>, vector<24x8xf32>, vector<14x8xf32> -> vector<14x8xf32>
    %24 = vector.broadcast %3 : vector<1x8xf32> to vector<14x8xf32>
    %25 = arith.addf %23, %24 : vector<14x8xf32>
    %cst_17 = arith.constant 0.000000e+00 : f32
    %26 = vector.broadcast %cst_17 : f32 to vector<14x8xf32>
    %27 = arith.maximumf %25, %26 : vector<14x8xf32>
    %28 = tpu.concatenate %6, %27, %6 in 0 : vector<1x8xf32>, vector<14x8xf32>, vector<1x8xf32> -> vector<16x8xf32>
    %29 = vector.extract_strided_slice %28 {offsets = [0, 0], sizes = [14, 8], strides = [1, 1]} : vector<16x8xf32> to vector<14x8xf32>
    %30 = vector.extract_strided_slice %28 {offsets = [1, 0], sizes = [14, 8], strides = [1, 1]} : vector<16x8xf32> to vector<14x8xf32>
    %31 = vector.extract_strided_slice %28 {offsets = [2, 0], sizes = [14, 8], strides = [1, 1]} : vector<16x8xf32> to vector<14x8xf32>
    %32 = tpu.concatenate %29, %30, %31 in 1 : vector<14x8xf32>, vector<14x8xf32>, vector<14x8xf32> -> vector<14x24xf32>
    %cst_18 = arith.constant dense<0.000000e+00> : vector<14x8xf32>
    %33 = tpu.matmul %32, %1, %cst_18 {dimension_numbers = #tpu.dot_dimension_numbers<[1], [0], [0], [1], [0, 0, 1, 1], [], []>} : vector<14x24xf32>, vector<24x8xf32>, vector<14x8xf32> -> vector<14x8xf32>
    %34 = vector.broadcast %3 : vector<1x8xf32> to vector<14x8xf32>
    %35 = arith.addf %33, %34 : vector<14x8xf32>
    %c0_19 = arith.constant 0 : index
    %c0_20 = arith.constant 0 : index
    %36 = vector.load %arg8[%c0_19, %c0_20] : memref<16x8xf32, #tpu.memory_space<vmem>>, vector<14x8xf32>
    tpu.vector_store %arg8[%c0_19, %c0_20], %35 {strides = array<i32>} : memref<16x8xf32, #tpu.memory_space<vmem>>, vector<14x8xf32>,
    %c14 = arith.constant 14 : index
    %c0_21 = arith.constant 0 : index
    %37 = vector.load %arg8[%c14, %c0_21] : memref<16x8xf32, #tpu.memory_space<vmem>>, vector<1x8xf32>
    tpu.vector_store %arg8[%c14, %c0_21], %6 {strides = array<i32>} : memref<16x8xf32, #tpu.memory_space<vmem>>, vector<1x8xf32>,
    %c0_22 = arith.constant 0 : index
    %c0_23 = arith.constant 0 : index
    %38 = tpu.strided_load %arg8[%c0_22, %c0_23] {strides = array<i32: 2, 1>} : memref<16x8xf32, #tpu.memory_space<vmem>>, vector<7x8xf32>
    %c1 = arith.constant 1 : index
    %c0_24 = arith.constant 0 : index
    %39 = tpu.strided_load %arg8[%c1, %c0_24] {strides = array<i32: 2, 1>} : memref<16x8xf32, #tpu.memory_space<vmem>>, vector<7x8xf32>
    %c2 = arith.constant 2 : index
    %c0_25 = arith.constant 0 : index
    %40 = tpu.strided_load %arg8[%c2, %c0_25] {strides = array<i32: 2, 1>} : memref<16x8xf32, #tpu.memory_space<vmem>>, vector<7x8xf32>
    %41 = arith.maximumf %38, %39 : vector<7x8xf32>
    %42 = arith.maximumf %41, %40 : vector<7x8xf32>
    %cst_26 = arith.constant 0.000000e+00 : f32
    %43 = vector.broadcast %cst_26 : f32 to vector<7x8xf32>
    %44 = arith.maximumf %42, %43 : vector<7x8xf32>
    %45 = tpu.concatenate %6, %44, %6 in 0 : vector<1x8xf32>, vector<7x8xf32>, vector<1x8xf32> -> vector<9x8xf32>
    %46 = vector.extract_strided_slice %45 {offsets = [0, 0], sizes = [7, 8], strides = [1, 1]} : vector<9x8xf32> to vector<7x8xf32>
    %47 = vector.extract_strided_slice %45 {offsets = [1, 0], sizes = [7, 8], strides = [1, 1]} : vector<9x8xf32> to vector<7x8xf32>
    %48 = vector.extract_strided_slice %45 {offsets = [2, 0], sizes = [7, 8], strides = [1, 1]} : vector<9x8xf32> to vector<7x8xf32>
    %49 = tpu.concatenate %46, %47, %48 in 1 : vector<7x8xf32>, vector<7x8xf32>, vector<7x8xf32> -> vector<7x24xf32>
    %cst_27 = arith.constant dense<0.000000e+00> : vector<7x8xf32>
    %50 = tpu.matmul %49, %1, %cst_27 {dimension_numbers = #tpu.dot_dimension_numbers<[1], [0], [0], [1], [0, 0, 1, 1], [], []>} : vector<7x24xf32>, vector<24x8xf32>, vector<7x8xf32> -> vector<7x8xf32>
    %51 = vector.broadcast %3 : vector<1x8xf32> to vector<7x8xf32>
    %52 = arith.addf %50, %51 : vector<7x8xf32>
    %cst_28 = arith.constant 0.000000e+00 : f32
    %53 = vector.broadcast %cst_28 : f32 to vector<7x8xf32>
    %54 = arith.maximumf %52, %53 : vector<7x8xf32>
    %55 = tpu.concatenate %6, %54, %6 in 0 : vector<1x8xf32>, vector<7x8xf32>, vector<1x8xf32> -> vector<9x8xf32>
    %56 = vector.extract_strided_slice %55 {offsets = [0, 0], sizes = [7, 8], strides = [1, 1]} : vector<9x8xf32> to vector<7x8xf32>
    %57 = vector.extract_strided_slice %55 {offsets = [1, 0], sizes = [7, 8], strides = [1, 1]} : vector<9x8xf32> to vector<7x8xf32>
    %58 = vector.extract_strided_slice %55 {offsets = [2, 0], sizes = [7, 8], strides = [1, 1]} : vector<9x8xf32> to vector<7x8xf32>
    %59 = tpu.concatenate %56, %57, %58 in 1 : vector<7x8xf32>, vector<7x8xf32>, vector<7x8xf32> -> vector<7x24xf32>
    %cst_29 = arith.constant dense<0.000000e+00> : vector<7x8xf32>
    %60 = tpu.matmul %59, %1, %cst_29 {dimension_numbers = #tpu.dot_dimension_numbers<[1], [0], [0], [1], [0, 0, 1, 1], [], []>} : vector<7x24xf32>, vector<24x8xf32>, vector<7x8xf32> -> vector<7x8xf32>
    %61 = vector.broadcast %3 : vector<1x8xf32> to vector<7x8xf32>
    %62 = arith.addf %60, %61 : vector<7x8xf32>
    %63 = arith.addf %62, %42 : vector<7x8xf32>
    %c0_30 = arith.constant 0 : index
    %c0_31 = arith.constant 0 : index
    %64 = vector.load %arg8[%c0_30, %c0_31] : memref<16x8xf32, #tpu.memory_space<vmem>>, vector<7x8xf32>
    tpu.vector_store %arg8[%c0_30, %c0_31], %63 {strides = array<i32>} : memref<16x8xf32, #tpu.memory_space<vmem>>, vector<7x8xf32>,
    %c7 = arith.constant 7 : index
    %c0_32 = arith.constant 0 : index
    %65 = vector.load %arg8[%c7, %c0_32] : memref<16x8xf32, #tpu.memory_space<vmem>>, vector<1x8xf32>
    tpu.vector_store %arg8[%c7, %c0_32], %6 {strides = array<i32>} : memref<16x8xf32, #tpu.memory_space<vmem>>, vector<1x8xf32>,
    %c0_33 = arith.constant 0 : index
    %c0_34 = arith.constant 0 : index
    %66 = tpu.strided_load %arg8[%c0_33, %c0_34] {strides = array<i32: 2, 1>} : memref<16x8xf32, #tpu.memory_space<vmem>>, vector<3x8xf32>
    %c1_35 = arith.constant 1 : index
    %c0_36 = arith.constant 0 : index
    %67 = tpu.strided_load %arg8[%c1_35, %c0_36] {strides = array<i32: 2, 1>} : memref<16x8xf32, #tpu.memory_space<vmem>>, vector<3x8xf32>
    %c2_37 = arith.constant 2 : index
    %c0_38 = arith.constant 0 : index
    %68 = tpu.strided_load %arg8[%c2_37, %c0_38] {strides = array<i32: 2, 1>} : memref<16x8xf32, #tpu.memory_space<vmem>>, vector<3x8xf32>
    %69 = arith.maximumf %66, %67 : vector<3x8xf32>
    %70 = arith.maximumf %69, %68 : vector<3x8xf32>
    %cst_39 = arith.constant 0.000000e+00 : f32
    %71 = vector.broadcast %cst_39 : f32 to vector<3x8xf32>
    %72 = arith.maximumf %70, %71 : vector<3x8xf32>
    %73 = tpu.concatenate %6, %72, %6 in 0 : vector<1x8xf32>, vector<3x8xf32>, vector<1x8xf32> -> vector<5x8xf32>
    %74 = vector.extract_strided_slice %73 {offsets = [0, 0], sizes = [3, 8], strides = [1, 1]} : vector<5x8xf32> to vector<3x8xf32>
    %75 = vector.extract_strided_slice %73 {offsets = [1, 0], sizes = [3, 8], strides = [1, 1]} : vector<5x8xf32> to vector<3x8xf32>
    %76 = vector.extract_strided_slice %73 {offsets = [2, 0], sizes = [3, 8], strides = [1, 1]} : vector<5x8xf32> to vector<3x8xf32>
    %77 = tpu.concatenate %74, %75, %76 in 1 : vector<3x8xf32>, vector<3x8xf32>, vector<3x8xf32> -> vector<3x24xf32>
    %cst_40 = arith.constant dense<0.000000e+00> : vector<3x8xf32>
    %78 = tpu.matmul %77, %1, %cst_40 {dimension_numbers = #tpu.dot_dimension_numbers<[1], [0], [0], [1], [0, 0, 1, 1], [], []>} : vector<3x24xf32>, vector<24x8xf32>, vector<3x8xf32> -> vector<3x8xf32>
    %79 = vector.broadcast %3 : vector<1x8xf32> to vector<3x8xf32>
    %80 = arith.addf %78, %79 : vector<3x8xf32>
    %cst_41 = arith.constant 0.000000e+00 : f32
    %81 = vector.broadcast %cst_41 : f32 to vector<3x8xf32>
    %82 = arith.maximumf %80, %81 : vector<3x8xf32>
    %83 = tpu.concatenate %6, %82, %6 in 0 : vector<1x8xf32>, vector<3x8xf32>, vector<1x8xf32> -> vector<5x8xf32>
    %84 = vector.extract_strided_slice %83 {offsets = [0, 0], sizes = [3, 8], strides = [1, 1]} : vector<5x8xf32> to vector<3x8xf32>
    %85 = vector.extract_strided_slice %83 {offsets = [1, 0], sizes = [3, 8], strides = [1, 1]} : vector<5x8xf32> to vector<3x8xf32>
    %86 = vector.extract_strided_slice %83 {offsets = [2, 0], sizes = [3, 8], strides = [1, 1]} : vector<5x8xf32> to vector<3x8xf32>
    %87 = tpu.concatenate %84, %85, %86 in 1 : vector<3x8xf32>, vector<3x8xf32>, vector<3x8xf32> -> vector<3x24xf32>
    %cst_42 = arith.constant dense<0.000000e+00> : vector<3x8xf32>
    %88 = tpu.matmul %87, %1, %cst_42 {dimension_numbers = #tpu.dot_dimension_numbers<[1], [0], [0], [1], [0, 0, 1, 1], [], []>} : vector<3x24xf32>, vector<24x8xf32>, vector<3x8xf32> -> vector<3x8xf32>
    %89 = vector.broadcast %3 : vector<1x8xf32> to vector<3x8xf32>
    %90 = arith.addf %88, %89 : vector<3x8xf32>
    %91 = arith.addf %90, %70 : vector<3x8xf32>
    %c0_43 = arith.constant 0 : index
    %c0_44 = arith.constant 0 : index
    %92 = vector.load %arg8[%c0_43, %c0_44] : memref<16x8xf32, #tpu.memory_space<vmem>>, vector<3x8xf32>
    tpu.vector_store %arg8[%c0_43, %c0_44], %91 {strides = array<i32>} : memref<16x8xf32, #tpu.memory_space<vmem>>, vector<3x8xf32>,
    %c3 = arith.constant 3 : index
    %c0_45 = arith.constant 0 : index
    %93 = vector.load %arg8[%c3, %c0_45] : memref<16x8xf32, #tpu.memory_space<vmem>>, vector<1x8xf32>
    tpu.vector_store %arg8[%c3, %c0_45], %6 {strides = array<i32>} : memref<16x8xf32, #tpu.memory_space<vmem>>, vector<1x8xf32>,
    %c0_46 = arith.constant 0 : index
    %c0_47 = arith.constant 0 : index
    %94 = tpu.strided_load %arg8[%c0_46, %c0_47] {strides = array<i32: 2, 1>} : memref<16x8xf32, #tpu.memory_space<vmem>>, vector<1x8xf32>
    %c1_48 = arith.constant 1 : index
    %c0_49 = arith.constant 0 : index
    %95 = tpu.strided_load %arg8[%c1_48, %c0_49] {strides = array<i32: 2, 1>} : memref<16x8xf32, #tpu.memory_space<vmem>>, vector<1x8xf32>
    %c2_50 = arith.constant 2 : index
    %c0_51 = arith.constant 0 : index
    %96 = tpu.strided_load %arg8[%c2_50, %c0_51] {strides = array<i32: 2, 1>} : memref<16x8xf32, #tpu.memory_space<vmem>>, vector<1x8xf32>
    %97 = arith.maximumf %94, %95 : vector<1x8xf32>
    %98 = arith.maximumf %97, %96 : vector<1x8xf32>
    %cst_52 = arith.constant 0.000000e+00 : f32
    %99 = vector.broadcast %cst_52 : f32 to vector<1x8xf32>
    %100 = arith.maximumf %98, %99 : vector<1x8xf32>
    %101 = tpu.concatenate %6, %100, %6 in 0 : vector<1x8xf32>, vector<1x8xf32>, vector<1x8xf32> -> vector<3x8xf32>
    %102 = vector.extract_strided_slice %101 {offsets = [0, 0], sizes = [1, 8], strides = [1, 1]} : vector<3x8xf32> to vector<1x8xf32>
    %103 = vector.extract_strided_slice %101 {offsets = [1, 0], sizes = [1, 8], strides = [1, 1]} : vector<3x8xf32> to vector<1x8xf32>
    %104 = vector.extract_strided_slice %101 {offsets = [2, 0], sizes = [1, 8], strides = [1, 1]} : vector<3x8xf32> to vector<1x8xf32>
    %105 = tpu.concatenate %102, %103, %104 in 1 : vector<1x8xf32>, vector<1x8xf32>, vector<1x8xf32> -> vector<1x24xf32>
    %cst_53 = arith.constant dense<0.000000e+00> : vector<1x8xf32>
    %106 = tpu.matmul %105, %1, %cst_53 {dimension_numbers = #tpu.dot_dimension_numbers<[1], [0], [0], [1], [0, 0, 1, 1], [], []>} : vector<1x24xf32>, vector<24x8xf32>, vector<1x8xf32> -> vector<1x8xf32>
    %107 = arith.addf %106, %3 : vector<1x8xf32>
    %cst_54 = arith.constant 0.000000e+00 : f32
    %108 = vector.broadcast %cst_54 : f32 to vector<1x8xf32>
    %109 = arith.maximumf %107, %108 : vector<1x8xf32>
    %110 = tpu.concatenate %6, %109, %6 in 0 : vector<1x8xf32>, vector<1x8xf32>, vector<1x8xf32> -> vector<3x8xf32>
    %111 = vector.extract_strided_slice %110 {offsets = [0, 0], sizes = [1, 8], strides = [1, 1]} : vector<3x8xf32> to vector<1x8xf32>
    %112 = vector.extract_strided_slice %110 {offsets = [1, 0], sizes = [1, 8], strides = [1, 1]} : vector<3x8xf32> to vector<1x8xf32>
    %113 = vector.extract_strided_slice %110 {offsets = [2, 0], sizes = [1, 8], strides = [1, 1]} : vector<3x8xf32> to vector<1x8xf32>
    %114 = tpu.concatenate %111, %112, %113 in 1 : vector<1x8xf32>, vector<1x8xf32>, vector<1x8xf32> -> vector<1x24xf32>
    %cst_55 = arith.constant dense<0.000000e+00> : vector<1x8xf32>
    %115 = tpu.matmul %114, %1, %cst_55 {dimension_numbers = #tpu.dot_dimension_numbers<[1], [0], [0], [1], [0, 0, 1, 1], [], []>} : vector<1x24xf32>, vector<24x8xf32>, vector<1x8xf32> -> vector<1x8xf32>
    %116 = arith.addf %115, %3 : vector<1x8xf32>
    %117 = arith.addf %116, %98 : vector<1x8xf32>
    %c1_56 = arith.constant 1 : index
    %c0_57 = arith.constant 0 : index
    %c0_58 = arith.constant 0 : index
    %118 = vector.load %arg0[%c1_56, %c0_57, %c0_58] : memref<2x16x32xf32, #tpu.memory_space<vmem>>, vector<1x16x32xf32>
    %119 = vector.shape_cast %118 : vector<1x16x32xf32> to vector<16x32xf32>
    %120 = vector.extract_strided_slice %119 {offsets = [0, 0], sizes = [14, 32], strides = [1, 1]} : vector<16x32xf32> to vector<14x32xf32>
    %121 = vector.extract_strided_slice %119 {offsets = [1, 0], sizes = [14, 32], strides = [1, 1]} : vector<16x32xf32> to vector<14x32xf32>
    %122 = vector.extract_strided_slice %119 {offsets = [2, 0], sizes = [14, 32], strides = [1, 1]} : vector<16x32xf32> to vector<14x32xf32>
    %123 = tpu.concatenate %120, %121, %122 in 1 : vector<14x32xf32>, vector<14x32xf32>, vector<14x32xf32> -> vector<14x96xf32>
    %cst_59 = arith.constant dense<0.000000e+00> : vector<14x8xf32>
    %124 = tpu.matmul %123, %0, %cst_59 {dimension_numbers = #tpu.dot_dimension_numbers<[1], [0], [0], [1], [0, 0, 1, 1], [], []>} : vector<14x96xf32>, vector<96x8xf32>, vector<14x8xf32> -> vector<14x8xf32>
    %125 = vector.broadcast %2 : vector<1x8xf32> to vector<14x8xf32>
    %126 = arith.addf %124, %125 : vector<14x8xf32>
    %cst_60 = arith.constant 0.000000e+00 : f32
    %127 = vector.broadcast %cst_60 : f32 to vector<14x8xf32>
    %128 = arith.maximumf %126, %127 : vector<14x8xf32>
    %129 = tpu.concatenate %6, %128, %6 in 0 : vector<1x8xf32>, vector<14x8xf32>, vector<1x8xf32> -> vector<16x8xf32>
    %130 = vector.extract_strided_slice %129 {offsets = [0, 0], sizes = [14, 8], strides = [1, 1]} : vector<16x8xf32> to vector<14x8xf32>
    %131 = vector.extract_strided_slice %129 {offsets = [1, 0], sizes = [14, 8], strides = [1, 1]} : vector<16x8xf32> to vector<14x8xf32>
    %132 = vector.extract_strided_slice %129 {offsets = [2, 0], sizes = [14, 8], strides = [1, 1]} : vector<16x8xf32> to vector<14x8xf32>
    %133 = tpu.concatenate %130, %131, %132 in 1 : vector<14x8xf32>, vector<14x8xf32>, vector<14x8xf32> -> vector<14x24xf32>
    %cst_61 = arith.constant dense<0.000000e+00> : vector<14x8xf32>
    %134 = tpu.matmul %133, %1, %cst_61 {dimension_numbers = #tpu.dot_dimension_numbers<[1], [0], [0], [1], [0, 0, 1, 1], [], []>} : vector<14x24xf32>, vector<24x8xf32>, vector<14x8xf32> -> vector<14x8xf32>
    %135 = vector.broadcast %3 : vector<1x8xf32> to vector<14x8xf32>
    %136 = arith.addf %134, %135 : vector<14x8xf32>
    %cst_62 = arith.constant 0.000000e+00 : f32
    %137 = vector.broadcast %cst_62 : f32 to vector<14x8xf32>
    %138 = arith.maximumf %136, %137 : vector<14x8xf32>
    %139 = tpu.concatenate %6, %138, %6 in 0 : vector<1x8xf32>, vector<14x8xf32>, vector<1x8xf32> -> vector<16x8xf32>
    %140 = vector.extract_strided_slice %139 {offsets = [0, 0], sizes = [14, 8], strides = [1, 1]} : vector<16x8xf32> to vector<14x8xf32>
    %141 = vector.extract_strided_slice %139 {offsets = [1, 0], sizes = [14, 8], strides = [1, 1]} : vector<16x8xf32> to vector<14x8xf32>
    %142 = vector.extract_strided_slice %139 {offsets = [2, 0], sizes = [14, 8], strides = [1, 1]} : vector<16x8xf32> to vector<14x8xf32>
    %143 = tpu.concatenate %140, %141, %142 in 1 : vector<14x8xf32>, vector<14x8xf32>, vector<14x8xf32> -> vector<14x24xf32>
    %cst_63 = arith.constant dense<0.000000e+00> : vector<14x8xf32>
    %144 = tpu.matmul %143, %1, %cst_63 {dimension_numbers = #tpu.dot_dimension_numbers<[1], [0], [0], [1], [0, 0, 1, 1], [], []>} : vector<14x24xf32>, vector<24x8xf32>, vector<14x8xf32> -> vector<14x8xf32>
    %145 = vector.broadcast %3 : vector<1x8xf32> to vector<14x8xf32>
    %146 = arith.addf %144, %145 : vector<14x8xf32>
    %c0_64 = arith.constant 0 : index
    %c0_65 = arith.constant 0 : index
    %147 = vector.load %arg8[%c0_64, %c0_65] : memref<16x8xf32, #tpu.memory_space<vmem>>, vector<14x8xf32>
    tpu.vector_store %arg8[%c0_64, %c0_65], %146 {strides = array<i32>} : memref<16x8xf32, #tpu.memory_space<vmem>>, vector<14x8xf32>,
    %c14_66 = arith.constant 14 : index
    %c0_67 = arith.constant 0 : index
    %148 = vector.load %arg8[%c14_66, %c0_67] : memref<16x8xf32, #tpu.memory_space<vmem>>, vector<1x8xf32>
    tpu.vector_store %arg8[%c14_66, %c0_67], %6 {strides = array<i32>} : memref<16x8xf32, #tpu.memory_space<vmem>>, vector<1x8xf32>,
    %c0_68 = arith.constant 0 : index
    %c0_69 = arith.constant 0 : index
    %149 = tpu.strided_load %arg8[%c0_68, %c0_69] {strides = array<i32: 2, 1>} : memref<16x8xf32, #tpu.memory_space<vmem>>, vector<7x8xf32>
    %c1_70 = arith.constant 1 : index
    %c0_71 = arith.constant 0 : index
    %150 = tpu.strided_load %arg8[%c1_70, %c0_71] {strides = array<i32: 2, 1>} : memref<16x8xf32, #tpu.memory_space<vmem>>, vector<7x8xf32>
    %c2_72 = arith.constant 2 : index
    %c0_73 = arith.constant 0 : index
    %151 = tpu.strided_load %arg8[%c2_72, %c0_73] {strides = array<i32: 2, 1>} : memref<16x8xf32, #tpu.memory_space<vmem>>, vector<7x8xf32>
    %152 = arith.maximumf %149, %150 : vector<7x8xf32>
    %153 = arith.maximumf %152, %151 : vector<7x8xf32>
    %cst_74 = arith.constant 0.000000e+00 : f32
    %154 = vector.broadcast %cst_74 : f32 to vector<7x8xf32>
    %155 = arith.maximumf %153, %154 : vector<7x8xf32>
    %156 = tpu.concatenate %6, %155, %6 in 0 : vector<1x8xf32>, vector<7x8xf32>, vector<1x8xf32> -> vector<9x8xf32>
    %157 = vector.extract_strided_slice %156 {offsets = [0, 0], sizes = [7, 8], strides = [1, 1]} : vector<9x8xf32> to vector<7x8xf32>
    %158 = vector.extract_strided_slice %156 {offsets = [1, 0], sizes = [7, 8], strides = [1, 1]} : vector<9x8xf32> to vector<7x8xf32>
    %159 = vector.extract_strided_slice %156 {offsets = [2, 0], sizes = [7, 8], strides = [1, 1]} : vector<9x8xf32> to vector<7x8xf32>
    %160 = tpu.concatenate %157, %158, %159 in 1 : vector<7x8xf32>, vector<7x8xf32>, vector<7x8xf32> -> vector<7x24xf32>
    %cst_75 = arith.constant dense<0.000000e+00> : vector<7x8xf32>
    %161 = tpu.matmul %160, %1, %cst_75 {dimension_numbers = #tpu.dot_dimension_numbers<[1], [0], [0], [1], [0, 0, 1, 1], [], []>} : vector<7x24xf32>, vector<24x8xf32>, vector<7x8xf32> -> vector<7x8xf32>
    %162 = vector.broadcast %3 : vector<1x8xf32> to vector<7x8xf32>
    %163 = arith.addf %161, %162 : vector<7x8xf32>
    %cst_76 = arith.constant 0.000000e+00 : f32
    %164 = vector.broadcast %cst_76 : f32 to vector<7x8xf32>
    %165 = arith.maximumf %163, %164 : vector<7x8xf32>
    %166 = tpu.concatenate %6, %165, %6 in 0 : vector<1x8xf32>, vector<7x8xf32>, vector<1x8xf32> -> vector<9x8xf32>
    %167 = vector.extract_strided_slice %166 {offsets = [0, 0], sizes = [7, 8], strides = [1, 1]} : vector<9x8xf32> to vector<7x8xf32>
    %168 = vector.extract_strided_slice %166 {offsets = [1, 0], sizes = [7, 8], strides = [1, 1]} : vector<9x8xf32> to vector<7x8xf32>
    %169 = vector.extract_strided_slice %166 {offsets = [2, 0], sizes = [7, 8], strides = [1, 1]} : vector<9x8xf32> to vector<7x8xf32>
    %170 = tpu.concatenate %167, %168, %169 in 1 : vector<7x8xf32>, vector<7x8xf32>, vector<7x8xf32> -> vector<7x24xf32>
    %cst_77 = arith.constant dense<0.000000e+00> : vector<7x8xf32>
    %171 = tpu.matmul %170, %1, %cst_77 {dimension_numbers = #tpu.dot_dimension_numbers<[1], [0], [0], [1], [0, 0, 1, 1], [], []>} : vector<7x24xf32>, vector<24x8xf32>, vector<7x8xf32> -> vector<7x8xf32>
    %172 = vector.broadcast %3 : vector<1x8xf32> to vector<7x8xf32>
    %173 = arith.addf %171, %172 : vector<7x8xf32>
    %174 = arith.addf %173, %153 : vector<7x8xf32>
    %c0_78 = arith.constant 0 : index
    %c0_79 = arith.constant 0 : index
    %175 = vector.load %arg8[%c0_78, %c0_79] : memref<16x8xf32, #tpu.memory_space<vmem>>, vector<7x8xf32>
    tpu.vector_store %arg8[%c0_78, %c0_79], %174 {strides = array<i32>} : memref<16x8xf32, #tpu.memory_space<vmem>>, vector<7x8xf32>,
    %c7_80 = arith.constant 7 : index
    %c0_81 = arith.constant 0 : index
    %176 = vector.load %arg8[%c7_80, %c0_81] : memref<16x8xf32, #tpu.memory_space<vmem>>, vector<1x8xf32>
    tpu.vector_store %arg8[%c7_80, %c0_81], %6 {strides = array<i32>} : memref<16x8xf32, #tpu.memory_space<vmem>>, vector<1x8xf32>,
    %c0_82 = arith.constant 0 : index
    %c0_83 = arith.constant 0 : index
    %177 = tpu.strided_load %arg8[%c0_82, %c0_83] {strides = array<i32: 2, 1>} : memref<16x8xf32, #tpu.memory_space<vmem>>, vector<3x8xf32>
    %c1_84 = arith.constant 1 : index
    %c0_85 = arith.constant 0 : index
    %178 = tpu.strided_load %arg8[%c1_84, %c0_85] {strides = array<i32: 2, 1>} : memref<16x8xf32, #tpu.memory_space<vmem>>, vector<3x8xf32>
    %c2_86 = arith.constant 2 : index
    %c0_87 = arith.constant 0 : index
    %179 = tpu.strided_load %arg8[%c2_86, %c0_87] {strides = array<i32: 2, 1>} : memref<16x8xf32, #tpu.memory_space<vmem>>, vector<3x8xf32>
    %180 = arith.maximumf %177, %178 : vector<3x8xf32>
    %181 = arith.maximumf %180, %179 : vector<3x8xf32>
    %cst_88 = arith.constant 0.000000e+00 : f32
    %182 = vector.broadcast %cst_88 : f32 to vector<3x8xf32>
    %183 = arith.maximumf %181, %182 : vector<3x8xf32>
    %184 = tpu.concatenate %6, %183, %6 in 0 : vector<1x8xf32>, vector<3x8xf32>, vector<1x8xf32> -> vector<5x8xf32>
    %185 = vector.extract_strided_slice %184 {offsets = [0, 0], sizes = [3, 8], strides = [1, 1]} : vector<5x8xf32> to vector<3x8xf32>
    %186 = vector.extract_strided_slice %184 {offsets = [1, 0], sizes = [3, 8], strides = [1, 1]} : vector<5x8xf32> to vector<3x8xf32>
    %187 = vector.extract_strided_slice %184 {offsets = [2, 0], sizes = [3, 8], strides = [1, 1]} : vector<5x8xf32> to vector<3x8xf32>
    %188 = tpu.concatenate %185, %186, %187 in 1 : vector<3x8xf32>, vector<3x8xf32>, vector<3x8xf32> -> vector<3x24xf32>
    %cst_89 = arith.constant dense<0.000000e+00> : vector<3x8xf32>
    %189 = tpu.matmul %188, %1, %cst_89 {dimension_numbers = #tpu.dot_dimension_numbers<[1], [0], [0], [1], [0, 0, 1, 1], [], []>} : vector<3x24xf32>, vector<24x8xf32>, vector<3x8xf32> -> vector<3x8xf32>
    %190 = vector.broadcast %3 : vector<1x8xf32> to vector<3x8xf32>
    %191 = arith.addf %189, %190 : vector<3x8xf32>
    %cst_90 = arith.constant 0.000000e+00 : f32
    %192 = vector.broadcast %cst_90 : f32 to vector<3x8xf32>
    %193 = arith.maximumf %191, %192 : vector<3x8xf32>
    %194 = tpu.concatenate %6, %193, %6 in 0 : vector<1x8xf32>, vector<3x8xf32>, vector<1x8xf32> -> vector<5x8xf32>
    %195 = vector.extract_strided_slice %194 {offsets = [0, 0], sizes = [3, 8], strides = [1, 1]} : vector<5x8xf32> to vector<3x8xf32>
    %196 = vector.extract_strided_slice %194 {offsets = [1, 0], sizes = [3, 8], strides = [1, 1]} : vector<5x8xf32> to vector<3x8xf32>
    %197 = vector.extract_strided_slice %194 {offsets = [2, 0], sizes = [3, 8], strides = [1, 1]} : vector<5x8xf32> to vector<3x8xf32>
    %198 = tpu.concatenate %195, %196, %197 in 1 : vector<3x8xf32>, vector<3x8xf32>, vector<3x8xf32> -> vector<3x24xf32>
    %cst_91 = arith.constant dense<0.000000e+00> : vector<3x8xf32>
    %199 = tpu.matmul %198, %1, %cst_91 {dimension_numbers = #tpu.dot_dimension_numbers<[1], [0], [0], [1], [0, 0, 1, 1], [], []>} : vector<3x24xf32>, vector<24x8xf32>, vector<3x8xf32> -> vector<3x8xf32>
    %200 = vector.broadcast %3 : vector<1x8xf32> to vector<3x8xf32>
    %201 = arith.addf %199, %200 : vector<3x8xf32>
    %202 = arith.addf %201, %181 : vector<3x8xf32>
    %c0_92 = arith.constant 0 : index
    %c0_93 = arith.constant 0 : index
    %203 = vector.load %arg8[%c0_92, %c0_93] : memref<16x8xf32, #tpu.memory_space<vmem>>, vector<3x8xf32>
    tpu.vector_store %arg8[%c0_92, %c0_93], %202 {strides = array<i32>} : memref<16x8xf32, #tpu.memory_space<vmem>>, vector<3x8xf32>,
    %c3_94 = arith.constant 3 : index
    %c0_95 = arith.constant 0 : index
    %204 = vector.load %arg8[%c3_94, %c0_95] : memref<16x8xf32, #tpu.memory_space<vmem>>, vector<1x8xf32>
    tpu.vector_store %arg8[%c3_94, %c0_95], %6 {strides = array<i32>} : memref<16x8xf32, #tpu.memory_space<vmem>>, vector<1x8xf32>,
    %c0_96 = arith.constant 0 : index
    %c0_97 = arith.constant 0 : index
    %205 = tpu.strided_load %arg8[%c0_96, %c0_97] {strides = array<i32: 2, 1>} : memref<16x8xf32, #tpu.memory_space<vmem>>, vector<1x8xf32>
    %c1_98 = arith.constant 1 : index
    %c0_99 = arith.constant 0 : index
    %206 = tpu.strided_load %arg8[%c1_98, %c0_99] {strides = array<i32: 2, 1>} : memref<16x8xf32, #tpu.memory_space<vmem>>, vector<1x8xf32>
    %c2_100 = arith.constant 2 : index
    %c0_101 = arith.constant 0 : index
    %207 = tpu.strided_load %arg8[%c2_100, %c0_101] {strides = array<i32: 2, 1>} : memref<16x8xf32, #tpu.memory_space<vmem>>, vector<1x8xf32>
    %208 = arith.maximumf %205, %206 : vector<1x8xf32>
    %209 = arith.maximumf %208, %207 : vector<1x8xf32>
    %cst_102 = arith.constant 0.000000e+00 : f32
    %210 = vector.broadcast %cst_102 : f32 to vector<1x8xf32>
    %211 = arith.maximumf %209, %210 : vector<1x8xf32>
    %212 = tpu.concatenate %6, %211, %6 in 0 : vector<1x8xf32>, vector<1x8xf32>, vector<1x8xf32> -> vector<3x8xf32>
    %213 = vector.extract_strided_slice %212 {offsets = [0, 0], sizes = [1, 8], strides = [1, 1]} : vector<3x8xf32> to vector<1x8xf32>
    %214 = vector.extract_strided_slice %212 {offsets = [1, 0], sizes = [1, 8], strides = [1, 1]} : vector<3x8xf32> to vector<1x8xf32>
    %215 = vector.extract_strided_slice %212 {offsets = [2, 0], sizes = [1, 8], strides = [1, 1]} : vector<3x8xf32> to vector<1x8xf32>
    %216 = tpu.concatenate %213, %214, %215 in 1 : vector<1x8xf32>, vector<1x8xf32>, vector<1x8xf32> -> vector<1x24xf32>
    %cst_103 = arith.constant dense<0.000000e+00> : vector<1x8xf32>
    %217 = tpu.matmul %216, %1, %cst_103 {dimension_numbers = #tpu.dot_dimension_numbers<[1], [0], [0], [1], [0, 0, 1, 1], [], []>} : vector<1x24xf32>, vector<24x8xf32>, vector<1x8xf32> -> vector<1x8xf32>
    %218 = arith.addf %217, %3 : vector<1x8xf32>
    %cst_104 = arith.constant 0.000000e+00 : f32
    %219 = vector.broadcast %cst_104 : f32 to vector<1x8xf32>
    %220 = arith.maximumf %218, %219 : vector<1x8xf32>
    %221 = tpu.concatenate %6, %220, %6 in 0 : vector<1x8xf32>, vector<1x8xf32>, vector<1x8xf32> -> vector<3x8xf32>
    %222 = vector.extract_strided_slice %221 {offsets = [0, 0], sizes = [1, 8], strides = [1, 1]} : vector<3x8xf32> to vector<1x8xf32>
    %223 = vector.extract_strided_slice %221 {offsets = [1, 0], sizes = [1, 8], strides = [1, 1]} : vector<3x8xf32> to vector<1x8xf32>
    %224 = vector.extract_strided_slice %221 {offsets = [2, 0], sizes = [1, 8], strides = [1, 1]} : vector<3x8xf32> to vector<1x8xf32>
    %225 = tpu.concatenate %222, %223, %224 in 1 : vector<1x8xf32>, vector<1x8xf32>, vector<1x8xf32> -> vector<1x24xf32>
    %cst_105 = arith.constant dense<0.000000e+00> : vector<1x8xf32>
    %226 = tpu.matmul %225, %1, %cst_105 {dimension_numbers = #tpu.dot_dimension_numbers<[1], [0], [0], [1], [0, 0, 1, 1], [], []>} : vector<1x24xf32>, vector<24x8xf32>, vector<1x8xf32> -> vector<1x8xf32>
    %227 = arith.addf %226, %3 : vector<1x8xf32>
    %228 = arith.addf %227, %209 : vector<1x8xf32>
    %229 = tpu.concatenate %117, %228 in 0 : vector<1x8xf32>, vector<1x8xf32> -> vector<2x8xf32>
    %cst_106 = arith.constant dense<0.000000e+00> : vector<2x4xf32>
    %230 = tpu.matmul %229, %4, %cst_106 {dimension_numbers = #tpu.dot_dimension_numbers<[1], [0], [0], [1], [0, 0, 1, 1], [], []>} : vector<2x8xf32>, vector<8x4xf32>, vector<2x4xf32> -> vector<2x4xf32>
    %231 = vector.broadcast %5 : vector<1x4xf32> to vector<2x4xf32>
    %232 = arith.addf %230, %231 : vector<2x4xf32>
    %c0_107 = arith.constant 0 : index
    %c0_108 = arith.constant 0 : index
    %233 = vector.load %arg7[%c0_107, %c0_108] : memref<2x4xf32, #tpu.memory_space<vmem>>, vector<2x4xf32>
    tpu.vector_store %arg7[%c0_107, %c0_108], %232 {strides = array<i32>} : memref<2x4xf32, #tpu.memory_space<vmem>>, vector<2x4xf32>,
    return
  }
}

</mosaic_0001>

<llo_original>
// kernel: dpcnn_forward.1
$region0: #{dpcnn_forward.1}
  #allocation0 [shape = 'u32[]', space=smem, size = 0x4, offset = 0x4, fixed_abs, tag = 'smem constant byte address 0x4 - core index']
  #allocation1 [shape = 'u32[144,128]{1,0:T(1,128)}', space=vmem, size = 0x12000, scoped, tag = 'internal scratch']
  #allocation2 [shape = 'f32[16,8]{1,0:T(8,128)}', space=vmem, size = 0x2000, scoped, tag = 'scratch operand']
  %s0 = inlined_call_operand.vmem [shape: f32[2,16,32], index: 0, kind: input, shape index: {}]
  %s1 = inlined_call_operand.vmem [shape: f32[96,8], index: 1, kind: input, shape index: {}]
  %s2 = inlined_call_operand.vmem [shape: f32[1,8], index: 2, kind: input, shape index: {}]
  %s3 = inlined_call_operand.vmem [shape: f32[24,8], index: 3, kind: input, shape index: {}]
  %s4 = inlined_call_operand.vmem [shape: f32[1,8], index: 4, kind: input, shape index: {}]
  %s5 = inlined_call_operand.vmem [shape: f32[8,4], index: 5, kind: input, shape index: {}]
  %s6 = inlined_call_operand.vmem [shape: f32[1,4], index: 6, kind: input, shape index: {}]
  %s7 = inlined_call_operand.hbm [shape: f32[2,4], index: 7, kind: output, shape index: {}]
  %s8 = sld [smem:[#allocation0]]
  $region38: #{dpcnn_forward.1} parent=0
    _
  %s10 = ssub.s32 1, %s8
  %s11 = scalar_select 0, %s10, %s8
  $region1: #{dpcnn_forward.1} parent=0
    #allocation3 [shape = 'u8[1024]{0}', space=vmem, size = 0x400, scoped, tag = 'output window, operand 0, single buffered']
    #allocation4 [shape = 's32[1]{0}', space=sflag, size = 0x4, scoped, tag = 'scoped memory for dpcnn_forward.1']
    %12 = vsyncpa [#allocation4], 0
    // Predicated region
    $region2: #{dpcnn_forward.1} parent=1 // pred_check
      _
    $region3: #{dpcnn_forward.1} parent=1 // pred_check_branch
      %14 = sbr.rel (0) target = $region5
    $region4: #{dpcnn_forward.1} parent=1 // pred_region
      _
    $region5: #{dpcnn_forward.1} parent=1 // pred_fallthru
      _
    // Predicated region
    $region6: #{dpcnn_forward.1} parent=1 // pred_check
      _
    $region7: #{dpcnn_forward.1} parent=1 // pred_check_branch
      %16 = sbr.rel (0) target = $region9
    $region8: #{dpcnn_forward.1} parent=1 // pred_region
      _
    $region9: #{dpcnn_forward.1} parent=1 // pred_fallthru
      _
    // Predicated region
    $region10: #{dpcnn_forward.1} parent=1 // pred_check
      _
    $region11: #{dpcnn_forward.1} parent=1 // pred_check_branch
      %18 = sbr.rel (0) target = $region13
    $region12: #{dpcnn_forward.1} parent=1 // pred_region
      _
    $region13: #{dpcnn_forward.1} parent=1 // pred_fallthru
      _
    // Predicated region
    $region14: #{dpcnn_forward.1} parent=1 // pred_check
      _
    $region15: #{dpcnn_forward.1} parent=1 // pred_check_branch
      %20 = sbr.rel (0) target = $region17
    $region16: #{dpcnn_forward.1} parent=1 // pred_region
      _
    $region17: #{dpcnn_forward.1} parent=1 // pred_fallthru
      _
    // Predicated region
    $region18: #{dpcnn_forward.1} parent=1 // pred_check
      _
    $region19: #{dpcnn_forward.1} parent=1 // pred_check_branch
      %22 = sbr.rel (0) target = $region21
    $region20: #{dpcnn_forward.1} parent=1 // pred_region
      _
    $region21: #{dpcnn_forward.1} parent=1 // pred_fallthru
      _
    // Predicated region
    $region22: #{dpcnn_forward.1} parent=1 // pred_check
      _
    $region23: #{dpcnn_forward.1} parent=1 // pred_check_branch
      %24 = sbr.rel (0) target = $region25
    $region24: #{dpcnn_forward.1} parent=1 // pred_region
      _
    $region25: #{dpcnn_forward.1} parent=1 // pred_fallthru
      _
    // Predicated region
    $region26: #{dpcnn_forward.1} parent=1 // pred_check
      _
    $region27: #{dpcnn_forward.1} parent=1 // pred_check_branch
      %26 = sbr.rel (0) target = $region29
    $region28: #{dpcnn_forward.1} parent=1 // pred_region
      _
    $region29: #{dpcnn_forward.1} parent=1 // pred_fallthru
      _
    %v27 = vld [vmem:[%s1] sm:$0xff]
    %v28 = vld [vmem:[%s1 + $0x8] sm:$0xff]
    %v29 = vld [vmem:[%s1 + $0x10] sm:$0xff]
    %v30 = vld [vmem:[%s1 + $0x18] sm:$0xff]
    %v31 = vld [vmem:[%s1 + $0x20] sm:$0xff]
    %v32 = vld [vmem:[%s1 + $0x28] sm:$0xff]
    %v33 = vld [vmem:[%s1 + $0x30] sm:$0xff]
    %v34 = vld [vmem:[%s1 + $0x38] sm:$0xff]
    %v35 = vld [vmem:[%s1 + $0x40] sm:$0xff]
    %v36 = vld [vmem:[%s1 + $0x48] sm:$0xff]
    %v37 = vld [vmem:[%s1 + $0x50] sm:$0xff]
    %v38 = vld [vmem:[%s1 + $0x58] sm:$0xff]
    %v39 = vld [vmem:[%s3] sm:$0xff]
    %v40 = vld [vmem:[%s3 + $0x8] sm:$0xff]
    %v41 = vld [vmem:[%s3 + $0x10] sm:$0xff]
    %v42 = vld [vmem:[%s2] sm:$0x1]
    %v43 = vld [vmem:[%s4] sm:$0x1]
    %v44 = vld [vmem:[%s5] sm:$0xff]
    %v45 = vld [vmem:[%s6] sm:$0x1]
    %v46 = vld [vmem:[%s0] sm:$0xff]
    %v47 = vld [vmem:[%s0 + $0x8] sm:$0xff]
    %vm50 = vcmask 1046528
    %v51 = vrot.slane %v46, 1
    %v52 = vrot.slane %v47, 1
    %v53 = vsel %vm50, %v51, %v52
    %54 = vrot.lane.b32.xlu0 %v53, 32
    %v55 = vpop.permute.xlu0 %54
    %56 = vrot.lane.b32.xlu0 %v52, 32
    %v57 = vpop.permute.xlu0 %56
    %vm60 = vcmask 1045504
    %v61 = vrot.slane %v46, 2
    %v62 = vrot.slane %v47, 2
    %v63 = vsel %vm60, %v61, %v62
    %64 = vrot.lane.b32.xlu0 %v63, 64
    %v65 = vpop.permute.xlu0 %64
    %66 = vrot.lane.b32.xlu0 %v62, 64
    %v67 = vpop.permute.xlu0 %66
    %vm70 = vcmask 261120
    %v71 = vsel %vm70, %v46, %v55
    %v72 = vsel %vm70, %v47, %v57
    %vm73 = vcmask 523264
    %v74 = vsel %vm73, %v71, %v65
    %v75 = vsel %vm73, %v72, %v67
    %v77 = vlaneseq
    %v78 = vshrl.u32 %v77, 7
    %v79 = vsub.s32 0, %v78
    %v80 = vrot.slane %v42, %v79
    %vm82 = vcmask 785408
    %v84 = vsel %vm82, %v74, 0
    %v87 = vsel %vm82, %v75, 0
    %89 = vmatprep.subr.mxu0 0.0
    %90 = vmatpush1.msra.mxu0 %v27
    %91 = vmatprep.subr.mxu0 0.0
    %92 = vmatpush1.msra.mxu0 %v28
    %93 = vmatprep.subr.mxu0 0.0
    %94 = vmatpush1.msra.mxu0 %v29
    %95 = vmatprep.subr.mxu0 0.0
    %96 = vmatpush1.msra.mxu0 %v30
    %97 = vmatprep.subr.mxu0 0.0
    %98 = vmatpush1.msra.mxu0 %v31
    %99 = vmatprep.subr.mxu0 0.0
    %100 = vmatpush1.msra.mxu0 %v32
    %101 = vmatprep.subr.mxu0 0.0
    %102 = vmatpush1.msra.mxu0 %v33
    %103 = vmatprep.subr.mxu0 0.0
    %104 = vmatpush1.msra.mxu0 %v34
    %105 = vmatprep.subr.mxu0 0.0
    %106 = vmatpush1.msra.mxu0 %v35
    %107 = vmatprep.subr.mxu0 0.0
    %108 = vmatpush1.msra.mxu0 %v36
    %109 = vmatprep.subr.mxu0 0.0
    %110 = vmatpush1.msra.mxu0 %v37
    %111 = vmatprep.subr.mxu0 0.0
    %112 = vmatpush1.msra.mxu0 %v38
    %113 = vmatprep.subr.mxu0 0.0
    %114 = vmatpush1.msra.mxu0 0.0
    %115 = vmatprep.subr.mxu0 0.0
    %116 = vmatpush1.msra.mxu0 0.0
    %117 = vmatprep.subr.mxu0 0.0
    %118 = vmatpush1.msra.mxu0 0.0
    %119 = vmatprep.subr.mxu0 0.0
    %120 = vmatpush1.msra.mxu0 0.0
    %121 = vmatprep.subr.mxu0 0.0
    %122 = vmatpush1.msra.mxu0 0.0
    %123 = vmatprep.subr.mxu0 0.0
    %124 = vmatpush1.msra.mxu0 0.0
    %125 = vmatprep.subr.mxu0 0.0
    %126 = vmatpush1.msra.mxu0 0.0
    %127 = vmatprep.subr.mxu0 0.0
    %128 = vmatpush1.msra.mxu0 0.0
    %129 = vmatprep.subr.mxu0 0.0
    %130 = vmatpush1.msra.mxu0 0.0
    %131 = vmatprep.subr.mxu0 0.0
    %132 = vmatpush1.msra.mxu0 0.0
    %133 = vmatprep.subr.mxu0 0.0
    %134 = vmatpush1.msra.mxu0 0.0
    %135 = vmatprep.subr.mxu0 0.0
    %136 = vmatpush1.msra.mxu0 0.0
    %137 = vmatprep.subr.mxu0 0.0
    %138 = vmatpush1.msra.mxu0 0.0
    %139 = vmatprep.subr.mxu0 0.0
    %140 = vmatpush1.msra.mxu0 0.0
    %141 = vmatprep.subr.mxu0 0.0
    %142 = vmatpush1.msra.mxu0 0.0
    %143 = vmatprep.subr.mxu0 0.0
    %144 = vmatpush1.msra.mxu0 0.0
    %145 = vmatprep.subr.mxu0 0.0
    %146 = vmatpush1.msra.mxu0 0.0
    %147 = vmatprep.subr.mxu0 0.0
    %148 = vmatpush1.msra.mxu0 0.0
    %149 = vmatprep.subr.mxu0 0.0
    %150 = vmatpush1.msra.mxu0 0.0
    %151 = vmatprep.subr.mxu0 0.0
    %152 = vmatpush1.msra.mxu0 0.0
    %153 = vmatprep.mubr.f32.mxu0 0.0
    %154 = vmatmul.mubr.f32.gmra.mrb[0].mxu0 %v84
    %v155 = vpop.f32.mrb[0].mxu0
    %v156 = vadd.f32 %v80, %v155
    %v157 = vpop.f32.mrb[0].mxu0
    %158 = vmatprep.mubr.f32.mxu0 0.0
    %159 = vmatmul.mubr.f32.gmra.mrb[0].mxu0 %v87
    %v160 = vpop.f32.mrb[0].mxu0
    %v161 = vadd.f32 %v80, %v160
    %v162 = vpop.f32.mrb[0].mxu0
    %163 = vdwg.mxu0
    %v164 = vmax.f32 %v156, 0.0
    %v165 = vmax.f32 %v161, 0.0
    %vm168 = vcmask 1040384
    %v169 = vrot.slane %v164, 7
    %v170 = vrot.slane %v165, 7
    %v171 = vsel %vm168, %v169, %v170
    %v174 = vsel %vm168, 0.0, %v169
    %v175 = vsel %vm50, %v171, 0.0
    %v178 = vrot.slane %v174, 1
    %v179 = vrot.slane %v175, 1
    %v180 = vsel %vm50, %v178, %v179
    %181 = vrot.lane.b32.xlu0 %v180, 8
    %v182 = vpop.permute.xlu0 %181
    %183 = vrot.lane.b32.xlu0 %v179, 8
    %v184 = vpop.permute.xlu0 %183
    %v187 = vrot.slane %v174, 2
    %v188 = vrot.slane %v175, 2
    %v189 = vsel %vm60, %v187, %v188
    %190 = vrot.lane.b32.xlu0 %v189, 16
    %v191 = vpop.permute.xlu0 %190
    %192 = vrot.lane.b32.xlu0 %v188, 16
    %v193 = vpop.permute.xlu0 %192
    %vm196 = vcmask 64512
    %v197 = vsel %vm196, %v174, %v182
    %v198 = vsel %vm196, %v175, %v184
    %vm199 = vcmask 130048
    %v200 = vsel %vm199, %v197, %v191
    %v201 = vsel %vm199, %v198, %v193
    %v203 = vlaneseq
    %v204 = vshrl.u32 %v203, 7
    %v205 = vsub.s32 0, %v204
    %v206 = vrot.slane %v43, %v205
    %vm208 = vcmask 195584
    %v210 = vsel %vm208, %v200, 0
    %v213 = vsel %vm208, %v201, 0
    %215 = vmatprep.subr.mxu0 0.0
    %216 = vmatpush1.msra.mxu0 %v39
    %217 = vmatprep.subr.mxu0 0.0
    %218 = vmatpush1.msra.mxu0 %v40
    %219 = vmatprep.subr.mxu0 0.0
    %220 = vmatpush1.msra.mxu0 %v41
    %221 = vmatprep.subr.mxu0 0.0
    %222 = vmatpush1.msra.mxu0 0.0
    %223 = vmatprep.subr.mxu0 0.0
    %224 = vmatpush1.msra.mxu0 0.0
    %225 = vmatprep.subr.mxu0 0.0
    %226 = vmatpush1.msra.mxu0 0.0
    %227 = vmatprep.subr.mxu0 0.0
    %228 = vmatpush1.msra.mxu0 0.0
    %229 = vmatprep.subr.mxu0 0.0
    %230 = vmatpush1.msra.mxu0 0.0
    %231 = vmatprep.subr.mxu0 0.0
    %232 = vmatpush1.msra.mxu0 0.0
    %233 = vmatprep.subr.mxu0 0.0
    %234 = vmatpush1.msra.mxu0 0.0
    %235 = vmatprep.subr.mxu0 0.0
    %236 = vmatpush1.msra.mxu0 0.0
    %237 = vmatprep.subr.mxu0 0.0
    %238 = vmatpush1.msra.mxu0 0.0
    %239 = vmatprep.subr.mxu0 0.0
    %240 = vmatpush1.msra.mxu0 0.0
    %241 = vmatprep.subr.mxu0 0.0
    %242 = vmatpush1.msra.mxu0 0.0
    %243 = vmatprep.subr.mxu0 0.0
    %244 = vmatpush1.msra.mxu0 0.0
    %245 = vmatprep.subr.mxu0 0.0
    %246 = vmatpush1.msra.mxu0 0.0
    %247 = vmatprep.subr.mxu0 0.0
    %248 = vmatpush1.msra.mxu0 0.0
    %249 = vmatprep.subr.mxu0 0.0
    %250 = vmatpush1.msra.mxu0 0.0
    %251 = vmatprep.subr.mxu0 0.0
    %252 = vmatpush1.msra.mxu0 0.0
    %253 = vmatprep.subr.mxu0 0.0
    %254 = vmatpush1.msra.mxu0 0.0
    %255 = vmatprep.subr.mxu0 0.0
    %256 = vmatpush1.msra.mxu0 0.0
    %257 = vmatprep.subr.mxu0 0.0
    %258 = vmatpush1.msra.mxu0 0.0
    %259 = vmatprep.subr.mxu0 0.0
    %260 = vmatpush1.msra.mxu0 0.0
    %261 = vmatprep.subr.mxu0 0.0
    %262 = vmatpush1.msra.mxu0 0.0
    %263 = vmatprep.subr.mxu0 0.0
    %264 = vmatpush1.msra.mxu0 0.0
    %265 = vmatprep.subr.mxu0 0.0
    %266 = vmatpush1.msra.mxu0 0.0
    %267 = vmatprep.subr.mxu0 0.0
    %268 = vmatpush1.msra.mxu0 0.0
    %269 = vmatprep.subr.mxu0 0.0
    %270 = vmatpush1.msra.mxu0 0.0
    %271 = vmatprep.subr.mxu0 0.0
    %272 = vmatpush1.msra.mxu0 0.0
    %273 = vmatprep.subr.mxu0 0.0
    %274 = vmatpush1.msra.mxu0 0.0
    %275 = vmatprep.subr.mxu0 0.0
    %276 = vmatpush1.msra.mxu0 0.0
    %277 = vmatprep.subr.mxu0 0.0
    %278 = vmatpush1.msra.mxu0 0.0
    %279 = vmatprep.mubr.f32.mxu0 0.0
    %280 = vmatmul.mubr.f32.gmra.mrb[0].mxu0 %v210
    %v281 = vpop.f32.mrb[0].mxu0
    %v282 = vadd.f32 %v206, %v281
    %v283 = vpop.f32.mrb[0].mxu0
    %284 = vmatprep.mubr.f32.mxu0 0.0
    %285 = vmatmul.mubr.f32.gmra.mrb[0].mxu0 %v213
    %v286 = vpop.f32.mrb[0].mxu0
    %v287 = vadd.f32 %v206, %v286
    %v288 = vpop.f32.mrb[0].mxu0
    %289 = vdwg.mxu0
    %v290 = vmax.f32 %v282, 0.0
    %v291 = vmax.f32 %v287, 0.0
    %v294 = vrot.slane %v290, 7
    %v295 = vrot.slane %v291, 7
    %v296 = vsel %vm168, %v294, %v295
    %v299 = vsel %vm168, 0.0, %v294
    %v300 = vsel %vm50, %v296, 0.0
    %v303 = vrot.slane %v299, 1
    %v304 = vrot.slane %v300, 1
    %v305 = vsel %vm50, %v303, %v304
    %306 = vrot.lane.b32.xlu0 %v305, 8
    %v307 = vpop.permute.xlu0 %306
    %308 = vrot.lane.b32.xlu0 %v304, 8
    %v309 = vpop.permute.xlu0 %308
    %v312 = vrot.slane %v299, 2
    %v313 = vrot.slane %v300, 2
    %v314 = vsel %vm60, %v312, %v313
    %315 = vrot.lane.b32.xlu0 %v314, 16
    %v316 = vpop.permute.xlu0 %315
    %317 = vrot.lane.b32.xlu0 %v313, 16
    %v318 = vpop.permute.xlu0 %317
    %v321 = vsel %vm196, %v299, %v307
    %v322 = vsel %vm196, %v300, %v309
    %v323 = vsel %vm199, %v321, %v316
    %v324 = vsel %vm199, %v322, %v318
    %v326 = vsel %vm208, %v323, 0
    %v329 = vsel %vm208, %v324, 0
    %331 = vmatprep.subr.mxu0 0.0
    %332 = vmatpush1.msra.mxu0 %v39
    %333 = vmatprep.subr.mxu0 0.0
    %334 = vmatpush1.msra.mxu0 %v40
    %335 = vmatprep.subr.mxu0 0.0
    %336 = vmatpush1.msra.mxu0 %v41
    %337 = vmatprep.subr.mxu0 0.0
    %338 = vmatpush1.msra.mxu0 0.0
    %339 = vmatprep.subr.mxu0 0.0
    %340 = vmatpush1.msra.mxu0 0.0
    %341 = vmatprep.subr.mxu0 0.0
    %342 = vmatpush1.msra.mxu0 0.0
    %343 = vmatprep.subr.mxu0 0.0
    %344 = vmatpush1.msra.mxu0 0.0
    %345 = vmatprep.subr.mxu0 0.0
    %346 = vmatpush1.msra.mxu0 0.0
    %347 = vmatprep.subr.mxu0 0.0
    %348 = vmatpush1.msra.mxu0 0.0
    %349 = vmatprep.subr.mxu0 0.0
    %350 = vmatpush1.msra.mxu0 0.0
    %351 = vmatprep.subr.mxu0 0.0
    %352 = vmatpush1.msra.mxu0 0.0
    %353 = vmatprep.subr.mxu0 0.0
    %354 = vmatpush1.msra.mxu0 0.0
    %355 = vmatprep.subr.mxu0 0.0
    %356 = vmatpush1.msra.mxu0 0.0
    %357 = vmatprep.subr.mxu0 0.0
    %358 = vmatpush1.msra.mxu0 0.0
    %359 = vmatprep.subr.mxu0 0.0
    %360 = vmatpush1.msra.mxu0 0.0
    %361 = vmatprep.subr.mxu0 0.0
    %362 = vmatpush1.msra.mxu0 0.0
    %363 = vmatprep.subr.mxu0 0.0
    %364 = vmatpush1.msra.mxu0 0.0
    %365 = vmatprep.subr.mxu0 0.0
    %366 = vmatpush1.msra.mxu0 0.0
    %367 = vmatprep.subr.mxu0 0.0
    %368 = vmatpush1.msra.mxu0 0.0
    %369 = vmatprep.subr.mxu0 0.0
    %370 = vmatpush1.msra.mxu0 0.0
    %371 = vmatprep.subr.mxu0 0.0
    %372 = vmatpush1.msra.mxu0 0.0
    %373 = vmatprep.subr.mxu0 0.0
    %374 = vmatpush1.msra.mxu0 0.0
    %375 = vmatprep.subr.mxu0 0.0
    %376 = vmatpush1.msra.mxu0 0.0
    %377 = vmatprep.subr.mxu0 0.0
    %378 = vmatpush1.msra.mxu0 0.0
    %379 = vmatprep.subr.mxu0 0.0
    %380 = vmatpush1.msra.mxu0 0.0
    %381 = vmatprep.subr.mxu0 0.0
    %382 = vmatpush1.msra.mxu0 0.0
    %383 = vmatprep.subr.mxu0 0.0
    %384 = vmatpush1.msra.mxu0 0.0
    %385 = vmatprep.subr.mxu0 0.0
    %386 = vmatpush1.msra.mxu0 0.0
    %387 = vmatprep.subr.mxu0 0.0
    %388 = vmatpush1.msra.mxu0 0.0
    %389 = vmatprep.subr.mxu0 0.0
    %390 = vmatpush1.msra.mxu0 0.0
    %391 = vmatprep.subr.mxu0 0.0
    %392 = vmatpush1.msra.mxu0 0.0
    %393 = vmatprep.subr.mxu0 0.0
    %394 = vmatpush1.msra.mxu0 0.0
    %395 = vmatprep.mubr.f32.mxu0 0.0
    %396 = vmatmul.mubr.f32.gmra.mrb[0].mxu0 %v326
    %v397 = vpop.f32.mrb[0].mxu0
    %v398 = vadd.f32 %v206, %v397
    %v399 = vpop.f32.mrb[0].mxu0
    %400 = vmatprep.mubr.f32.mxu0 0.0
    %401 = vmatmul.mubr.f32.gmra.mrb[0].mxu0 %v329
    %v402 = vpop.f32.mrb[0].mxu0
    %v403 = vadd.f32 %v206, %v402
    %v404 = vpop.f32.mrb[0].mxu0
    %405 = vdwg.mxu0
    %406 = vst.msk [vmem:[#allocation2] sm:$0xff] %vm196, %v398
    %vm407 = vcmask 62464
    %408 = vst.msk [vmem:[#allocation2 + $0x8] sm:$0x3f] %vm407, %v403
    %vm409 = vcmask 57344
    %410 = vst.msk [vmem:[#allocation2 + $0xe] sm:$0x1] %vm409, 0.0
    %v411 = vld [vmem:[#allocation2] ss:$2 sm:$0x7f]
    %s412 = scalar_lea.vmem [#allocation2], 1
    %v413 = vld [vmem:[%s412] ss:$2 sm:$0x7f]
    %s414 = scalar_lea.vmem [#allocation2], 2
    %v415 = vld [vmem:[%s414] ss:$2 sm:$0x7f]
    %v416 = vmax.f32 %v411, %v413
    %v417 = vmax.f32 %v416, %v415
    %v418 = vmax.f32 %v417, 0.0
    %v420 = vrot.slane %v418, 7
    %v422 = vsel %vm168, 0.0, %v420
    %v424 = vrot.slane %v422, 1
    %425 = vrot.lane.b32.xlu0 %v424, 8
    %v426 = vpop.permute.xlu0 %425
    %v429 = vrot.slane %v422, 2
    %v430 = vrot.slane 0.0, 2
    %v431 = vsel %vm60, %v429, %v430
    %432 = vrot.lane.b32.xlu0 %v431, 16
    %v433 = vpop.permute.xlu0 %432
    %v435 = vsel %vm196, %v422, %v426
    %v436 = vsel %vm199, %v435, %v433
    %v438 = vsel %vm208, %v436, 0
    %440 = vmatprep.subr.mxu0 0.0
    %441 = vmatpush1.msra.mxu0 %v39
    %442 = vmatprep.subr.mxu0 0.0
    %443 = vmatpush1.msra.mxu0 %v40
    %444 = vmatprep.subr.mxu0 0.0
    %445 = vmatpush1.msra.mxu0 %v41
    %446 = vmatprep.subr.mxu0 0.0
    %447 = vmatpush1.msra.mxu0 0.0
    %448 = vmatprep.subr.mxu0 0.0
    %449 = vmatpush1.msra.mxu0 0.0
    %450 = vmatprep.subr.mxu0 0.0
    %451 = vmatpush1.msra.mxu0 0.0
    %452 = vmatprep.subr.mxu0 0.0
    %453 = vmatpush1.msra.mxu0 0.0
    %454 = vmatprep.subr.mxu0 0.0
    %455 = vmatpush1.msra.mxu0 0.0
    %456 = vmatprep.subr.mxu0 0.0
    %457 = vmatpush1.msra.mxu0 0.0
    %458 = vmatprep.subr.mxu0 0.0
    %459 = vmatpush1.msra.mxu0 0.0
    %460 = vmatprep.subr.mxu0 0.0
    %461 = vmatpush1.msra.mxu0 0.0
    %462 = vmatprep.subr.mxu0 0.0
    %463 = vmatpush1.msra.mxu0 0.0
    %464 = vmatprep.subr.mxu0 0.0
    %465 = vmatpush1.msra.mxu0 0.0
    %466 = vmatprep.subr.mxu0 0.0
    %467 = vmatpush1.msra.mxu0 0.0
    %468 = vmatprep.subr.mxu0 0.0
    %469 = vmatpush1.msra.mxu0 0.0
    %470 = vmatprep.subr.mxu0 0.0
    %471 = vmatpush1.msra.mxu0 0.0
    %472 = vmatprep.subr.mxu0 0.0
    %473 = vmatpush1.msra.mxu0 0.0
    %474 = vmatprep.subr.mxu0 0.0
    %475 = vmatpush1.msra.mxu0 0.0
    %476 = vmatprep.subr.mxu0 0.0
    %477 = vmatpush1.msra.mxu0 0.0
    %478 = vmatprep.subr.mxu0 0.0
    %479 = vmatpush1.msra.mxu0 0.0
    %480 = vmatprep.subr.mxu0 0.0
    %481 = vmatpush1.msra.mxu0 0.0
    %482 = vmatprep.subr.mxu0 0.0
    %483 = vmatpush1.msra.mxu0 0.0
    %484 = vmatprep.subr.mxu0 0.0
    %485 = vmatpush1.msra.mxu0 0.0
    %486 = vmatprep.subr.mxu0 0.0
    %487 = vmatpush1.msra.mxu0 0.0
    %488 = vmatprep.subr.mxu0 0.0
    %489 = vmatpush1.msra.mxu0 0.0
    %490 = vmatprep.subr.mxu0 0.0
    %491 = vmatpush1.msra.mxu0 0.0
    %492 = vmatprep.subr.mxu0 0.0
    %493 = vmatpush1.msra.mxu0 0.0
    %494 = vmatprep.subr.mxu0 0.0
    %495 = vmatpush1.msra.mxu0 0.0
    %496 = vmatprep.subr.mxu0 0.0
    %497 = vmatpush1.msra.mxu0 0.0
    %498 = vmatprep.subr.mxu0 0.0
    %499 = vmatpush1.msra.mxu0 0.0
    %500 = vmatprep.subr.mxu0 0.0
    %501 = vmatpush1.msra.mxu0 0.0
    %502 = vmatprep.subr.mxu0 0.0
    %503 = vmatpush1.msra.mxu0 0.0
    %504 = vmatprep.mubr.f32.mxu0 0.0
    %505 = vmatmul.mubr.f32.gmra.mrb[0].mxu0 %v438
    %v506 = vpop.f32.mrb[0].mxu0
    %v507 = vadd.f32 %v206, %v506
    %v508 = vpop.f32.mrb[0].mxu0
    %509 = vdwg.mxu0
    %v510 = vmax.f32 %v507, 0.0
    %v512 = vrot.slane %v510, 7
    %v514 = vsel %vm168, 0.0, %v512
    %v516 = vrot.slane %v514, 1
    %517 = vrot.lane.b32.xlu0 %v516, 8
    %v518 = vpop.permute.xlu0 %517
    %v520 = vrot.slane %v514, 2
    %v521 = vsel %vm60, %v520, %v430
    %522 = vrot.lane.b32.xlu0 %v521, 16
    %v523 = vpop.permute.xlu0 %522
    %v525 = vsel %vm196, %v514, %v518
    %v526 = vsel %vm199, %v525, %v523
    %v528 = vsel %vm208, %v526, 0
    %530 = vmatprep.subr.mxu0 0.0
    %531 = vmatpush1.msra.mxu0 %v39
    %532 = vmatprep.subr.mxu0 0.0
    %533 = vmatpush1.msra.mxu0 %v40
    %534 = vmatprep.subr.mxu0 0.0
    %535 = vmatpush1.msra.mxu0 %v41
    %536 = vmatprep.subr.mxu0 0.0
    %537 = vmatpush1.msra.mxu0 0.0
    %538 = vmatprep.subr.mxu0 0.0
    %539 = vmatpush1.msra.mxu0 0.0
    %540 = vmatprep.subr.mxu0 0.0
    %541 = vmatpush1.msra.mxu0 0.0
    %542 = vmatprep.subr.mxu0 0.0
    %543 = vmatpush1.msra.mxu0 0.0
    %544 = vmatprep.subr.mxu0 0.0
    %545 = vmatpush1.msra.mxu0 0.0
    %546 = vmatprep.subr.mxu0 0.0
    %547 = vmatpush1.msra.mxu0 0.0
    %548 = vmatprep.subr.mxu0 0.0
    %549 = vmatpush1.msra.mxu0 0.0
    %550 = vmatprep.subr.mxu0 0.0
    %551 = vmatpush1.msra.mxu0 0.0
    %552 = vmatprep.subr.mxu0 0.0
    %553 = vmatpush1.msra.mxu0 0.0
    %554 = vmatprep.subr.mxu0 0.0
    %555 = vmatpush1.msra.mxu0 0.0
    %556 = vmatprep.subr.mxu0 0.0
    %557 = vmatpush1.msra.mxu0 0.0
    %558 = vmatprep.subr.mxu0 0.0
    %559 = vmatpush1.msra.mxu0 0.0
    %560 = vmatprep.subr.mxu0 0.0
    %561 = vmatpush1.msra.mxu0 0.0
    %562 = vmatprep.subr.mxu0 0.0
    %563 = vmatpush1.msra.mxu0 0.0
    %564 = vmatprep.subr.mxu0 0.0
    %565 = vmatpush1.msra.mxu0 0.0
    %566 = vmatprep.subr.mxu0 0.0
    %567 = vmatpush1.msra.mxu0 0.0
    %568 = vmatprep.subr.mxu0 0.0
    %569 = vmatpush1.msra.mxu0 0.0
    %570 = vmatprep.subr.mxu0 0.0
    %571 = vmatpush1.msra.mxu0 0.0
    %572 = vmatprep.subr.mxu0 0.0
    %573 = vmatpush1.msra.mxu0 0.0
    %574 = vmatprep.subr.mxu0 0.0
    %575 = vmatpush1.msra.mxu0 0.0
    %576 = vmatprep.subr.mxu0 0.0
    %577 = vmatpush1.msra.mxu0 0.0
    %578 = vmatprep.subr.mxu0 0.0
    %579 = vmatpush1.msra.mxu0 0.0
    %580 = vmatprep.subr.mxu0 0.0
    %581 = vmatpush1.msra.mxu0 0.0
    %582 = vmatprep.subr.mxu0 0.0
    %583 = vmatpush1.msra.mxu0 0.0
    %584 = vmatprep.subr.mxu0 0.0
    %585 = vmatpush1.msra.mxu0 0.0
    %586 = vmatprep.subr.mxu0 0.0
    %587 = vmatpush1.msra.mxu0 0.0
    %588 = vmatprep.subr.mxu0 0.0
    %589 = vmatpush1.msra.mxu0 0.0
    %590 = vmatprep.subr.mxu0 0.0
    %591 = vmatpush1.msra.mxu0 0.0
    %592 = vmatprep.subr.mxu0 0.0
    %593 = vmatpush1.msra.mxu0 0.0
    %594 = vmatprep.mubr.f32.mxu0 0.0
    %595 = vmatmul.mubr.f32.gmra.mrb[0].mxu0 %v528
    %v596 = vpop.f32.mrb[0].mxu0
    %v597 = vadd.f32 %v206, %v596
    %v598 = vpop.f32.mrb[0].mxu0
    %599 = vdwg.mxu0
    %v600 = vadd.f32 %v597, %v417
    %vm601 = vcmask 63488
    %602 = vst.msk [vmem:[#allocation2] sm:$0x7f] %vm601, %v600
    %603 = vst.msk [vmem:[#allocation2 + $0x7] sm:$0x1] %vm409, 0.0
    %v604 = vld [vmem:[#allocation2] ss:$2 sm:$0x7]
    %v605 = vld [vmem:[%s412] ss:$2 sm:$0x7]
    %v606 = vld [vmem:[%s414] ss:$2 sm:$0x7]
    %v607 = vmax.f32 %v604, %v605
    %v608 = vmax.f32 %v607, %v606
    %v609 = vmax.f32 %v608, 0.0
    %v611 = vrot.slane %v609, 7
    %v613 = vsel %vm168, 0.0, %v611
    %vm614 = vcmask 1043456
    %v615 = vsel %vm614, %v613, 0.0
    %v617 = vrot.slane %v615, 1
    %618 = vrot.lane.b32.xlu0 %v617, 8
    %v619 = vpop.permute.xlu0 %618
    %v621 = vrot.slane %v615, 2
    %622 = vrot.lane.b32.xlu0 %v621, 16
    %v623 = vpop.permute.xlu0 %622
    %v625 = vsel %vm196, %v615, %v619
    %v626 = vsel %vm199, %v625, %v623
    %v628 = vsel %vm208, %v626, 0
    %630 = vmatprep.subr.mxu0 0.0
    %631 = vmatpush1.msra.mxu0 %v39
    %632 = vmatprep.subr.mxu0 0.0
    %633 = vmatpush1.msra.mxu0 %v40
    %634 = vmatprep.subr.mxu0 0.0
    %635 = vmatpush1.msra.mxu0 %v41
    %636 = vmatprep.subr.mxu0 0.0
    %637 = vmatpush1.msra.mxu0 0.0
    %638 = vmatprep.subr.mxu0 0.0
    %639 = vmatpush1.msra.mxu0 0.0
    %640 = vmatprep.subr.mxu0 0.0
    %641 = vmatpush1.msra.mxu0 0.0
    %642 = vmatprep.subr.mxu0 0.0
    %643 = vmatpush1.msra.mxu0 0.0
    %644 = vmatprep.subr.mxu0 0.0
    %645 = vmatpush1.msra.mxu0 0.0
    %646 = vmatprep.subr.mxu0 0.0
    %647 = vmatpush1.msra.mxu0 0.0
    %648 = vmatprep.subr.mxu0 0.0
    %649 = vmatpush1.msra.mxu0 0.0
    %650 = vmatprep.subr.mxu0 0.0
    %651 = vmatpush1.msra.mxu0 0.0
    %652 = vmatprep.subr.mxu0 0.0
    %653 = vmatpush1.msra.mxu0 0.0
    %654 = vmatprep.subr.mxu0 0.0
    %655 = vmatpush1.msra.mxu0 0.0
    %656 = vmatprep.subr.mxu0 0.0
    %657 = vmatpush1.msra.mxu0 0.0
    %658 = vmatprep.subr.mxu0 0.0
    %659 = vmatpush1.msra.mxu0 0.0
    %660 = vmatprep.subr.mxu0 0.0
    %661 = vmatpush1.msra.mxu0 0.0
    %662 = vmatprep.subr.mxu0 0.0
    %663 = vmatpush1.msra.mxu0 0.0
    %664 = vmatprep.subr.mxu0 0.0
    %665 = vmatpush1.msra.mxu0 0.0
    %666 = vmatprep.subr.mxu0 0.0
    %667 = vmatpush1.msra.mxu0 0.0
    %668 = vmatprep.subr.mxu0 0.0
    %669 = vmatpush1.msra.mxu0 0.0
    %670 = vmatprep.subr.mxu0 0.0
    %671 = vmatpush1.msra.mxu0 0.0
    %672 = vmatprep.subr.mxu0 0.0
    %673 = vmatpush1.msra.mxu0 0.0
    %674 = vmatprep.subr.mxu0 0.0
    %675 = vmatpush1.msra.mxu0 0.0
    %676 = vmatprep.subr.mxu0 0.0
    %677 = vmatpush1.msra.mxu0 0.0
    %678 = vmatprep.subr.mxu0 0.0
    %679 = vmatpush1.msra.mxu0 0.0
    %680 = vmatprep.subr.mxu0 0.0
    %681 = vmatpush1.msra.mxu0 0.0
    %682 = vmatprep.subr.mxu0 0.0
    %683 = vmatpush1.msra.mxu0 0.0
    %684 = vmatprep.subr.mxu0 0.0
    %685 = vmatpush1.msra.mxu0 0.0
    %686 = vmatprep.subr.mxu0 0.0
    %687 = vmatpush1.msra.mxu0 0.0
    %688 = vmatprep.subr.mxu0 0.0
    %689 = vmatpush1.msra.mxu0 0.0
    %690 = vmatprep.subr.mxu0 0.0
    %691 = vmatpush1.msra.mxu0 0.0
    %692 = vmatprep.subr.mxu0 0.0
    %693 = vmatpush1.msra.mxu0 0.0
    %694 = vmatprep.mubr.f32.mxu0 0.0
    %695 = vmatmul.mubr.f32.gmra.mrb[0].mxu0 %v628
    %v696 = vpop.f32.mrb[0].mxu0
    %v697 = vadd.f32 %v206, %v696
    %v698 = vpop.f32.mrb[0].mxu0
    %699 = vdwg.mxu0
    %v700 = vmax.f32 %v697, 0.0
    %v702 = vrot.slane %v700, 7
    %v704 = vsel %vm168, 0.0, %v702
    %v705 = vsel %vm614, %v704, 0.0
    %v707 = vrot.slane %v705, 1
    %708 = vrot.lane.b32.xlu0 %v707, 8
    %v709 = vpop.permute.xlu0 %708
    %v711 = vrot.slane %v705, 2
    %712 = vrot.lane.b32.xlu0 %v711, 16
    %v713 = vpop.permute.xlu0 %712
    %v715 = vsel %vm196, %v705, %v709
    %v716 = vsel %vm199, %v715, %v713
    %v718 = vsel %vm208, %v716, 0
    %720 = vmatprep.subr.mxu0 0.0
    %721 = vmatpush1.msra.mxu0 %v39
    %722 = vmatprep.subr.mxu0 0.0
    %723 = vmatpush1.msra.mxu0 %v40
    %724 = vmatprep.subr.mxu0 0.0
    %725 = vmatpush1.msra.mxu0 %v41
    %726 = vmatprep.subr.mxu0 0.0
    %727 = vmatpush1.msra.mxu0 0.0
    %728 = vmatprep.subr.mxu0 0.0
    %729 = vmatpush1.msra.mxu0 0.0
    %730 = vmatprep.subr.mxu0 0.0
    %731 = vmatpush1.msra.mxu0 0.0
    %732 = vmatprep.subr.mxu0 0.0
    %733 = vmatpush1.msra.mxu0 0.0
    %734 = vmatprep.subr.mxu0 0.0
    %735 = vmatpush1.msra.mxu0 0.0
    %736 = vmatprep.subr.mxu0 0.0
    %737 = vmatpush1.msra.mxu0 0.0
    %738 = vmatprep.subr.mxu0 0.0
    %739 = vmatpush1.msra.mxu0 0.0
    %740 = vmatprep.subr.mxu0 0.0
    %741 = vmatpush1.msra.mxu0 0.0
    %742 = vmatprep.subr.mxu0 0.0
    %743 = vmatpush1.msra.mxu0 0.0
    %744 = vmatprep.subr.mxu0 0.0
    %745 = vmatpush1.msra.mxu0 0.0
    %746 = vmatprep.subr.mxu0 0.0
    %747 = vmatpush1.msra.mxu0 0.0
    %748 = vmatprep.subr.mxu0 0.0
    %749 = vmatpush1.msra.mxu0 0.0
    %750 = vmatprep.subr.mxu0 0.0
    %751 = vmatpush1.msra.mxu0 0.0
    %752 = vmatprep.subr.mxu0 0.0
    %753 = vmatpush1.msra.mxu0 0.0
    %754 = vmatprep.subr.mxu0 0.0
    %755 = vmatpush1.msra.mxu0 0.0
    %756 = vmatprep.subr.mxu0 0.0
    %757 = vmatpush1.msra.mxu0 0.0
    %758 = vmatprep.subr.mxu0 0.0
    %759 = vmatpush1.msra.mxu0 0.0
    %760 = vmatprep.subr.mxu0 0.0
    %761 = vmatpush1.msra.mxu0 0.0
    %762 = vmatprep.subr.mxu0 0.0
    %763 = vmatpush1.msra.mxu0 0.0
    %764 = vmatprep.subr.mxu0 0.0
    %765 = vmatpush1.msra.mxu0 0.0
    %766 = vmatprep.subr.mxu0 0.0
    %767 = vmatpush1.msra.mxu0 0.0
    %768 = vmatprep.subr.mxu0 0.0
    %769 = vmatpush1.msra.mxu0 0.0
    %770 = vmatprep.subr.mxu0 0.0
    %771 = vmatpush1.msra.mxu0 0.0
    %772 = vmatprep.subr.mxu0 0.0
    %773 = vmatpush1.msra.mxu0 0.0
    %774 = vmatprep.subr.mxu0 0.0
    %775 = vmatpush1.msra.mxu0 0.0
    %776 = vmatprep.subr.mxu0 0.0
    %777 = vmatpush1.msra.mxu0 0.0
    %778 = vmatprep.subr.mxu0 0.0
    %779 = vmatpush1.msra.mxu0 0.0
    %780 = vmatprep.subr.mxu0 0.0
    %781 = vmatpush1.msra.mxu0 0.0
    %782 = vmatprep.subr.mxu0 0.0
    %783 = vmatpush1.msra.mxu0 0.0
    %784 = vmatprep.mubr.f32.mxu0 0.0
    %785 = vmatmul.mubr.f32.gmra.mrb[0].mxu0 %v718
    %v786 = vpop.f32.mrb[0].mxu0
    %v787 = vadd.f32 %v206, %v786
    %v788 = vpop.f32.mrb[0].mxu0
    %789 = vdwg.mxu0
    %v790 = vadd.f32 %v787, %v608
    %vm791 = vcmask 59392
    %792 = vst.msk [vmem:[#allocation2] sm:$0x7] %vm791, %v790
    %793 = vst.msk [vmem:[#allocation2 + $0x3] sm:$0x1] %vm409, 0.0
    %v794 = vld [vmem:[#allocation2] ss:$2 sm:$0x1]
    %v795 = vld [vmem:[%s412] ss:$2 sm:$0x1]
    %v796 = vld [vmem:[%s414] ss:$2 sm:$0x1]
    %v797 = vmax.f32 %v794, %v795
    %v798 = vmax.f32 %v797, %v796
    %v799 = vmax.f32 %v798, 0.0
    %v801 = vrot.slane %v799, 7
    %v803 = vsel %vm168, 0.0, %v801
    %vm804 = vcmask 1041408
    %v805 = vsel %vm804, %v803, 0.0
    %v807 = vrot.slane %v805, 1
    %808 = vrot.lane.b32.xlu0 %v807, 8
    %v809 = vpop.permute.xlu0 %808
    %v811 = vrot.slane %v805, 2
    %812 = vrot.lane.b32.xlu0 %v811, 16
    %v813 = vpop.permute.xlu0 %812
    %v815 = vsel %vm196, %v805, %v809
    %v816 = vsel %vm199, %v815, %v813
    %v818 = vsel %vm208, %v816, 0
    %820 = vmatprep.subr.mxu0 0.0
    %821 = vmatpush1.msra.mxu0 %v39
    %822 = vmatprep.subr.mxu0 0.0
    %823 = vmatpush1.msra.mxu0 %v40
    %824 = vmatprep.subr.mxu0 0.0
    %825 = vmatpush1.msra.mxu0 %v41
    %826 = vmatprep.subr.mxu0 0.0
    %827 = vmatpush1.msra.mxu0 0.0
    %828 = vmatprep.subr.mxu0 0.0
    %829 = vmatpush1.msra.mxu0 0.0
    %830 = vmatprep.subr.mxu0 0.0
    %831 = vmatpush1.msra.mxu0 0.0
    %832 = vmatprep.subr.mxu0 0.0
    %833 = vmatpush1.msra.mxu0 0.0
    %834 = vmatprep.subr.mxu0 0.0
    %835 = vmatpush1.msra.mxu0 0.0
    %836 = vmatprep.subr.mxu0 0.0
    %837 = vmatpush1.msra.mxu0 0.0
    %838 = vmatprep.subr.mxu0 0.0
    %839 = vmatpush1.msra.mxu0 0.0
    %840 = vmatprep.subr.mxu0 0.0
    %841 = vmatpush1.msra.mxu0 0.0
    %842 = vmatprep.subr.mxu0 0.0
    %843 = vmatpush1.msra.mxu0 0.0
    %844 = vmatprep.subr.mxu0 0.0
    %845 = vmatpush1.msra.mxu0 0.0
    %846 = vmatprep.subr.mxu0 0.0
    %847 = vmatpush1.msra.mxu0 0.0
    %848 = vmatprep.subr.mxu0 0.0
    %849 = vmatpush1.msra.mxu0 0.0
    %850 = vmatprep.subr.mxu0 0.0
    %851 = vmatpush1.msra.mxu0 0.0
    %852 = vmatprep.subr.mxu0 0.0
    %853 = vmatpush1.msra.mxu0 0.0
    %854 = vmatprep.subr.mxu0 0.0
    %855 = vmatpush1.msra.mxu0 0.0
    %856 = vmatprep.subr.mxu0 0.0
    %857 = vmatpush1.msra.mxu0 0.0
    %858 = vmatprep.subr.mxu0 0.0
    %859 = vmatpush1.msra.mxu0 0.0
    %860 = vmatprep.subr.mxu0 0.0
    %861 = vmatpush1.msra.mxu0 0.0
    %862 = vmatprep.subr.mxu0 0.0
    %863 = vmatpush1.msra.mxu0 0.0
    %864 = vmatprep.subr.mxu0 0.0
    %865 = vmatpush1.msra.mxu0 0.0
    %866 = vmatprep.subr.mxu0 0.0
    %867 = vmatpush1.msra.mxu0 0.0
    %868 = vmatprep.subr.mxu0 0.0
    %869 = vmatpush1.msra.mxu0 0.0
    %870 = vmatprep.subr.mxu0 0.0
    %871 = vmatpush1.msra.mxu0 0.0
    %872 = vmatprep.subr.mxu0 0.0
    %873 = vmatpush1.msra.mxu0 0.0
    %874 = vmatprep.subr.mxu0 0.0
    %875 = vmatpush1.msra.mxu0 0.0
    %876 = vmatprep.subr.mxu0 0.0
    %877 = vmatpush1.msra.mxu0 0.0
    %878 = vmatprep.subr.mxu0 0.0
    %879 = vmatpush1.msra.mxu0 0.0
    %880 = vmatprep.subr.mxu0 0.0
    %881 = vmatpush1.msra.mxu0 0.0
    %882 = vmatprep.subr.mxu0 0.0
    %883 = vmatpush1.msra.mxu0 0.0
    %884 = vmatprep.mubr.f32.mxu0 0.0
    %885 = vmatmul.mubr.f32.gmra.mrb[0].mxu0 %v818
    %v886 = vpop.f32.mrb[0].mxu0
    %v887 = vadd.f32 %v43, %v886
    %v888 = vpop.f32.mrb[0].mxu0
    %889 = vdwg.mxu0
    %v890 = vmax.f32 %v887, 0.0
    %v892 = vrot.slane %v890, 7
    %v894 = vsel %vm168, 0.0, %v892
    %v895 = vsel %vm804, %v894, 0.0
    %v897 = vrot.slane %v895, 1
    %898 = vrot.lane.b32.xlu0 %v897, 8
    %v899 = vpop.permute.xlu0 %898
    %v901 = vrot.slane %v895, 2
    %902 = vrot.lane.b32.xlu0 %v901, 16
    %v903 = vpop.permute.xlu0 %902
    %v905 = vsel %vm196, %v895, %v899
    %v906 = vsel %vm199, %v905, %v903
    %v908 = vsel %vm208, %v906, 0
    %910 = vmatprep.subr.mxu0 0.0
    %911 = vmatpush1.msra.mxu0 %v39
    %912 = vmatprep.subr.mxu0 0.0
    %913 = vmatpush1.msra.mxu0 %v40
    %914 = vmatprep.subr.mxu0 0.0
    %915 = vmatpush1.msra.mxu0 %v41
    %916 = vmatprep.subr.mxu0 0.0
    %917 = vmatpush1.msra.mxu0 0.0
    %918 = vmatprep.subr.mxu0 0.0
    %919 = vmatpush1.msra.mxu0 0.0
    %920 = vmatprep.subr.mxu0 0.0
    %921 = vmatpush1.msra.mxu0 0.0
    %922 = vmatprep.subr.mxu0 0.0
    %923 = vmatpush1.msra.mxu0 0.0
    %924 = vmatprep.subr.mxu0 0.0
    %925 = vmatpush1.msra.mxu0 0.0
    %926 = vmatprep.subr.mxu0 0.0
    %927 = vmatpush1.msra.mxu0 0.0
    %928 = vmatprep.subr.mxu0 0.0
    %929 = vmatpush1.msra.mxu0 0.0
    %930 = vmatprep.subr.mxu0 0.0
    %931 = vmatpush1.msra.mxu0 0.0
    %932 = vmatprep.subr.mxu0 0.0
    %933 = vmatpush1.msra.mxu0 0.0
    %934 = vmatprep.subr.mxu0 0.0
    %935 = vmatpush1.msra.mxu0 0.0
    %936 = vmatprep.subr.mxu0 0.0
    %937 = vmatpush1.msra.mxu0 0.0
    %938 = vmatprep.subr.mxu0 0.0
    %939 = vmatpush1.msra.mxu0 0.0
    %940 = vmatprep.subr.mxu0 0.0
    %941 = vmatpush1.msra.mxu0 0.0
    %942 = vmatprep.subr.mxu0 0.0
    %943 = vmatpush1.msra.mxu0 0.0
    %944 = vmatprep.subr.mxu0 0.0
    %945 = vmatpush1.msra.mxu0 0.0
    %946 = vmatprep.subr.mxu0 0.0
    %947 = vmatpush1.msra.mxu0 0.0
    %948 = vmatprep.subr.mxu0 0.0
    %949 = vmatpush1.msra.mxu0 0.0
    %950 = vmatprep.subr.mxu0 0.0
    %951 = vmatpush1.msra.mxu0 0.0
    %952 = vmatprep.subr.mxu0 0.0
    %953 = vmatpush1.msra.mxu0 0.0
    %954 = vmatprep.subr.mxu0 0.0
    %955 = vmatpush1.msra.mxu0 0.0
    %956 = vmatprep.subr.mxu0 0.0
    %957 = vmatpush1.msra.mxu0 0.0
    %958 = vmatprep.subr.mxu0 0.0
    %959 = vmatpush1.msra.mxu0 0.0
    %960 = vmatprep.subr.mxu0 0.0
    %961 = vmatpush1.msra.mxu0 0.0
    %962 = vmatprep.subr.mxu0 0.0
    %963 = vmatpush1.msra.mxu0 0.0
    %964 = vmatprep.subr.mxu0 0.0
    %965 = vmatpush1.msra.mxu0 0.0
    %966 = vmatprep.subr.mxu0 0.0
    %967 = vmatpush1.msra.mxu0 0.0
    %968 = vmatprep.subr.mxu0 0.0
    %969 = vmatpush1.msra.mxu0 0.0
    %970 = vmatprep.subr.mxu0 0.0
    %971 = vmatpush1.msra.mxu0 0.0
    %972 = vmatprep.subr.mxu0 0.0
    %973 = vmatpush1.msra.mxu0 0.0
    %974 = vmatprep.mubr.f32.mxu0 0.0
    %975 = vmatmul.mubr.f32.gmra.mrb[0].mxu0 %v908
    %v976 = vpop.f32.mrb[0].mxu0
    %v977 = vadd.f32 %v43, %v976
    %v978 = vpop.f32.mrb[0].mxu0
    %979 = vdwg.mxu0
    %v980 = vadd.f32 %v977, %v798
    %s981 = scalar_lea.vmem %s0, 16
    %v982 = vld [vmem:[%s981] sm:$0xff]
    %v983 = vld [vmem:[%s981 + $0x8] sm:$0xff]
    %v986 = vrot.slane %v982, 1
    %v987 = vrot.slane %v983, 1
    %v988 = vsel %vm50, %v986, %v987
    %989 = vrot.lane.b32.xlu0 %v988, 32
    %v990 = vpop.permute.xlu0 %989
    %991 = vrot.lane.b32.xlu0 %v987, 32
    %v992 = vpop.permute.xlu0 %991
    %v995 = vrot.slane %v982, 2
    %v996 = vrot.slane %v983, 2
    %v997 = vsel %vm60, %v995, %v996
    %998 = vrot.lane.b32.xlu0 %v997, 64
    %v999 = vpop.permute.xlu0 %998
    %1000 = vrot.lane.b32.xlu0 %v996, 64
    %v1001 = vpop.permute.xlu0 %1000
    %v1004 = vsel %vm70, %v982, %v990
    %v1005 = vsel %vm70, %v983, %v992
    %v1006 = vsel %vm73, %v1004, %v999
    %v1007 = vsel %vm73, %v1005, %v1001
    %v1009 = vsel %vm82, %v1006, 0
    %v1012 = vsel %vm82, %v1007, 0
    %1014 = vmatprep.subr.mxu0 0.0
    %1015 = vmatpush1.msra.mxu0 %v27
    %1016 = vmatprep.subr.mxu0 0.0
    %1017 = vmatpush1.msra.mxu0 %v28
    %1018 = vmatprep.subr.mxu0 0.0
    %1019 = vmatpush1.msra.mxu0 %v29
    %1020 = vmatprep.subr.mxu0 0.0
    %1021 = vmatpush1.msra.mxu0 %v30
    %1022 = vmatprep.subr.mxu0 0.0
    %1023 = vmatpush1.msra.mxu0 %v31
    %1024 = vmatprep.subr.mxu0 0.0
    %1025 = vmatpush1.msra.mxu0 %v32
    %1026 = vmatprep.subr.mxu0 0.0
    %1027 = vmatpush1.msra.mxu0 %v33
    %1028 = vmatprep.subr.mxu0 0.0
    %1029 = vmatpush1.msra.mxu0 %v34
    %1030 = vmatprep.subr.mxu0 0.0
    %1031 = vmatpush1.msra.mxu0 %v35
    %1032 = vmatprep.subr.mxu0 0.0
    %1033 = vmatpush1.msra.mxu0 %v36
    %1034 = vmatprep.subr.mxu0 0.0
    %1035 = vmatpush1.msra.mxu0 %v37
    %1036 = vmatprep.subr.mxu0 0.0
    %1037 = vmatpush1.msra.mxu0 %v38
    %1038 = vmatprep.subr.mxu0 0.0
    %1039 = vmatpush1.msra.mxu0 0.0
    %1040 = vmatprep.subr.mxu0 0.0
    %1041 = vmatpush1.msra.mxu0 0.0
    %1042 = vmatprep.subr.mxu0 0.0
    %1043 = vmatpush1.msra.mxu0 0.0
    %1044 = vmatprep.subr.mxu0 0.0
    %1045 = vmatpush1.msra.mxu0 0.0
    %1046 = vmatprep.subr.mxu0 0.0
    %1047 = vmatpush1.msra.mxu0 0.0
    %1048 = vmatprep.subr.mxu0 0.0
    %1049 = vmatpush1.msra.mxu0 0.0
    %1050 = vmatprep.subr.mxu0 0.0
    %1051 = vmatpush1.msra.mxu0 0.0
    %1052 = vmatprep.subr.mxu0 0.0
    %1053 = vmatpush1.msra.mxu0 0.0
    %1054 = vmatprep.subr.mxu0 0.0
    %1055 = vmatpush1.msra.mxu0 0.0
    %1056 = vmatprep.subr.mxu0 0.0
    %1057 = vmatpush1.msra.mxu0 0.0
    %1058 = vmatprep.subr.mxu0 0.0
    %1059 = vmatpush1.msra.mxu0 0.0
    %1060 = vmatprep.subr.mxu0 0.0
    %1061 = vmatpush1.msra.mxu0 0.0
    %1062 = vmatprep.subr.mxu0 0.0
    %1063 = vmatpush1.msra.mxu0 0.0
    %1064 = vmatprep.subr.mxu0 0.0
    %1065 = vmatpush1.msra.mxu0 0.0
    %1066 = vmatprep.subr.mxu0 0.0
    %1067 = vmatpush1.msra.mxu0 0.0
    %1068 = vmatprep.subr.mxu0 0.0
    %1069 = vmatpush1.msra.mxu0 0.0
    %1070 = vmatprep.subr.mxu0 0.0
    %1071 = vmatpush1.msra.mxu0 0.0
    %1072 = vmatprep.subr.mxu0 0.0
    %1073 = vmatpush1.msra.mxu0 0.0
    %1074 = vmatprep.subr.mxu0 0.0
    %1075 = vmatpush1.msra.mxu0 0.0
    %1076 = vmatprep.subr.mxu0 0.0
    %1077 = vmatpush1.msra.mxu0 0.0
    %1078 = vmatprep.mubr.f32.mxu0 0.0
    %1079 = vmatmul.mubr.f32.gmra.mrb[0].mxu0 %v1009
    %v1080 = vpop.f32.mrb[0].mxu0
    %v1081 = vadd.f32 %v80, %v1080
    %v1082 = vpop.f32.mrb[0].mxu0
    %1083 = vmatprep.mubr.f32.mxu0 0.0
    %1084 = vmatmul.mubr.f32.gmra.mrb[0].mxu0 %v1012
    %v1085 = vpop.f32.mrb[0].mxu0
    %v1086 = vadd.f32 %v80, %v1085
    %v1087 = vpop.f32.mrb[0].mxu0
    %1088 = vdwg.mxu0
    %v1089 = vmax.f32 %v1081, 0.0
    %v1090 = vmax.f32 %v1086, 0.0
    %v1093 = vrot.slane %v1089, 7
    %v1094 = vrot.slane %v1090, 7
    %v1095 = vsel %vm168, %v1093, %v1094
    %v1098 = vsel %vm168, 0.0, %v1093
    %v1099 = vsel %vm50, %v1095, 0.0
    %v1102 = vrot.slane %v1098, 1
    %v1103 = vrot.slane %v1099, 1
    %v1104 = vsel %vm50, %v1102, %v1103
    %1105 = vrot.lane.b32.xlu0 %v1104, 8
    %v1106 = vpop.permute.xlu0 %1105
    %1107 = vrot.lane.b32.xlu0 %v1103, 8
    %v1108 = vpop.permute.xlu0 %1107
    %v1111 = vrot.slane %v1098, 2
    %v1112 = vrot.slane %v1099, 2
    %v1113 = vsel %vm60, %v1111, %v1112
    %1114 = vrot.lane.b32.xlu0 %v1113, 16
    %v1115 = vpop.permute.xlu0 %1114
    %1116 = vrot.lane.b32.xlu0 %v1112, 16
    %v1117 = vpop.permute.xlu0 %1116
    %v1120 = vsel %vm196, %v1098, %v1106
    %v1121 = vsel %vm196, %v1099, %v1108
    %v1122 = vsel %vm199, %v1120, %v1115
    %v1123 = vsel %vm199, %v1121, %v1117
    %v1125 = vsel %vm208, %v1122, 0
    %v1128 = vsel %vm208, %v1123, 0
    %1130 = vmatprep.subr.mxu0 0.0
    %1131 = vmatpush1.msra.mxu0 %v39
    %1132 = vmatprep.subr.mxu0 0.0
    %1133 = vmatpush1.msra.mxu0 %v40
    %1134 = vmatprep.subr.mxu0 0.0
    %1135 = vmatpush1.msra.mxu0 %v41
    %1136 = vmatprep.subr.mxu0 0.0
    %1137 = vmatpush1.msra.mxu0 0.0
    %1138 = vmatprep.subr.mxu0 0.0
    %1139 = vmatpush1.msra.mxu0 0.0
    %1140 = vmatprep.subr.mxu0 0.0
    %1141 = vmatpush1.msra.mxu0 0.0
    %1142 = vmatprep.subr.mxu0 0.0
    %1143 = vmatpush1.msra.mxu0 0.0
    %1144 = vmatprep.subr.mxu0 0.0
    %1145 = vmatpush1.msra.mxu0 0.0
    %1146 = vmatprep.subr.mxu0 0.0
    %1147 = vmatpush1.msra.mxu0 0.0
    %1148 = vmatprep.subr.mxu0 0.0
    %1149 = vmatpush1.msra.mxu0 0.0
    %1150 = vmatprep.subr.mxu0 0.0
    %1151 = vmatpush1.msra.mxu0 0.0
    %1152 = vmatprep.subr.mxu0 0.0
    %1153 = vmatpush1.msra.mxu0 0.0
    %1154 = vmatprep.subr.mxu0 0.0
    %1155 = vmatpush1.msra.mxu0 0.0
    %1156 = vmatprep.subr.mxu0 0.0
    %1157 = vmatpush1.msra.mxu0 0.0
    %1158 = vmatprep.subr.mxu0 0.0
    %1159 = vmatpush1.msra.mxu0 0.0
    %1160 = vmatprep.subr.mxu0 0.0
    %1161 = vmatpush1.msra.mxu0 0.0
    %1162 = vmatprep.subr.mxu0 0.0
    %1163 = vmatpush1.msra.mxu0 0.0
    %1164 = vmatprep.subr.mxu0 0.0
    %1165 = vmatpush1.msra.mxu0 0.0
    %1166 = vmatprep.subr.mxu0 0.0
    %1167 = vmatpush1.msra.mxu0 0.0
    %1168 = vmatprep.subr.mxu0 0.0
    %1169 = vmatpush1.msra.mxu0 0.0
    %1170 = vmatprep.subr.mxu0 0.0
    %1171 = vmatpush1.msra.mxu0 0.0
    %1172 = vmatprep.subr.mxu0 0.0
    %1173 = vmatpush1.msra.mxu0 0.0
    %1174 = vmatprep.subr.mxu0 0.0
    %1175 = vmatpush1.msra.mxu0 0.0
    %1176 = vmatprep.subr.mxu0 0.0
    %1177 = vmatpush1.msra.mxu0 0.0
    %1178 = vmatprep.subr.mxu0 0.0
    %1179 = vmatpush1.msra.mxu0 0.0
    %1180 = vmatprep.subr.mxu0 0.0
    %1181 = vmatpush1.msra.mxu0 0.0
    %1182 = vmatprep.subr.mxu0 0.0
    %1183 = vmatpush1.msra.mxu0 0.0
    %1184 = vmatprep.subr.mxu0 0.0
    %1185 = vmatpush1.msra.mxu0 0.0
    %1186 = vmatprep.subr.mxu0 0.0
    %1187 = vmatpush1.msra.mxu0 0.0
    %1188 = vmatprep.subr.mxu0 0.0
    %1189 = vmatpush1.msra.mxu0 0.0
    %1190 = vmatprep.subr.mxu0 0.0
    %1191 = vmatpush1.msra.mxu0 0.0
    %1192 = vmatprep.subr.mxu0 0.0
    %1193 = vmatpush1.msra.mxu0 0.0
    %1194 = vmatprep.mubr.f32.mxu0 0.0
    %1195 = vmatmul.mubr.f32.gmra.mrb[0].mxu0 %v1125
    %v1196 = vpop.f32.mrb[0].mxu0
    %v1197 = vadd.f32 %v206, %v1196
    %v1198 = vpop.f32.mrb[0].mxu0
    %1199 = vmatprep.mubr.f32.mxu0 0.0
    %1200 = vmatmul.mubr.f32.gmra.mrb[0].mxu0 %v1128
    %v1201 = vpop.f32.mrb[0].mxu0
    %v1202 = vadd.f32 %v206, %v1201
    %v1203 = vpop.f32.mrb[0].mxu0
    %1204 = vdwg.mxu0
    %v1205 = vmax.f32 %v1197, 0.0
    %v1206 = vmax.f32 %v1202, 0.0
    %v1209 = vrot.slane %v1205, 7
    %v1210 = vrot.slane %v1206, 7
    %v1211 = vsel %vm168, %v1209, %v1210
    %v1214 = vsel %vm168, 0.0, %v1209
    %v1215 = vsel %vm50, %v1211, 0.0
    %v1218 = vrot.slane %v1214, 1
    %v1219 = vrot.slane %v1215, 1
    %v1220 = vsel %vm50, %v1218, %v1219
    %1221 = vrot.lane.b32.xlu0 %v1220, 8
    %v1222 = vpop.permute.xlu0 %1221
    %1223 = vrot.lane.b32.xlu0 %v1219, 8
    %v1224 = vpop.permute.xlu0 %1223
    %v1227 = vrot.slane %v1214, 2
    %v1228 = vrot.slane %v1215, 2
    %v1229 = vsel %vm60, %v1227, %v1228
    %1230 = vrot.lane.b32.xlu0 %v1229, 16
    %v1231 = vpop.permute.xlu0 %1230
    %1232 = vrot.lane.b32.xlu0 %v1228, 16
    %v1233 = vpop.permute.xlu0 %1232
    %v1236 = vsel %vm196, %v1214, %v1222
    %v1237 = vsel %vm196, %v1215, %v1224
    %v1238 = vsel %vm199, %v1236, %v1231
    %v1239 = vsel %vm199, %v1237, %v1233
    %v1241 = vsel %vm208, %v1238, 0
    %v1244 = vsel %vm208, %v1239, 0
    %1246 = vmatprep.subr.mxu0 0.0
    %1247 = vmatpush1.msra.mxu0 %v39
    %1248 = vmatprep.subr.mxu0 0.0
    %1249 = vmatpush1.msra.mxu0 %v40
    %1250 = vmatprep.subr.mxu0 0.0
    %1251 = vmatpush1.msra.mxu0 %v41
    %1252 = vmatprep.subr.mxu0 0.0
    %1253 = vmatpush1.msra.mxu0 0.0
    %1254 = vmatprep.subr.mxu0 0.0
    %1255 = vmatpush1.msra.mxu0 0.0
    %1256 = vmatprep.subr.mxu0 0.0
    %1257 = vmatpush1.msra.mxu0 0.0
    %1258 = vmatprep.subr.mxu0 0.0
    %1259 = vmatpush1.msra.mxu0 0.0
    %1260 = vmatprep.subr.mxu0 0.0
    %1261 = vmatpush1.msra.mxu0 0.0
    %1262 = vmatprep.subr.mxu0 0.0
    %1263 = vmatpush1.msra.mxu0 0.0
    %1264 = vmatprep.subr.mxu0 0.0
    %1265 = vmatpush1.msra.mxu0 0.0
    %1266 = vmatprep.subr.mxu0 0.0
    %1267 = vmatpush1.msra.mxu0 0.0
    %1268 = vmatprep.subr.mxu0 0.0
    %1269 = vmatpush1.msra.mxu0 0.0
    %1270 = vmatprep.subr.mxu0 0.0
    %1271 = vmatpush1.msra.mxu0 0.0
    %1272 = vmatprep.subr.mxu0 0.0
    %1273 = vmatpush1.msra.mxu0 0.0
    %1274 = vmatprep.subr.mxu0 0.0
    %1275 = vmatpush1.msra.mxu0 0.0
    %1276 = vmatprep.subr.mxu0 0.0
    %1277 = vmatpush1.msra.mxu0 0.0
    %1278 = vmatprep.subr.mxu0 0.0
    %1279 = vmatpush1.msra.mxu0 0.0
    %1280 = vmatprep.subr.mxu0 0.0
    %1281 = vmatpush1.msra.mxu0 0.0
    %1282 = vmatprep.subr.mxu0 0.0
    %1283 = vmatpush1.msra.mxu0 0.0
    %1284 = vmatprep.subr.mxu0 0.0
    %1285 = vmatpush1.msra.mxu0 0.0
    %1286 = vmatprep.subr.mxu0 0.0
    %1287 = vmatpush1.msra.mxu0 0.0
    %1288 = vmatprep.subr.mxu0 0.0
    %1289 = vmatpush1.msra.mxu0 0.0
    %1290 = vmatprep.subr.mxu0 0.0
    %1291 = vmatpush1.msra.mxu0 0.0
    %1292 = vmatprep.subr.mxu0 0.0
    %1293 = vmatpush1.msra.mxu0 0.0
    %1294 = vmatprep.subr.mxu0 0.0
    %1295 = vmatpush1.msra.mxu0 0.0
    %1296 = vmatprep.subr.mxu0 0.0
    %1297 = vmatpush1.msra.mxu0 0.0
    %1298 = vmatprep.subr.mxu0 0.0
    %1299 = vmatpush1.msra.mxu0 0.0
    %1300 = vmatprep.subr.mxu0 0.0
    %1301 = vmatpush1.msra.mxu0 0.0
    %1302 = vmatprep.subr.mxu0 0.0
    %1303 = vmatpush1.msra.mxu0 0.0
    %1304 = vmatprep.subr.mxu0 0.0
    %1305 = vmatpush1.msra.mxu0 0.0
    %1306 = vmatprep.subr.mxu0 0.0
    %1307 = vmatpush1.msra.mxu0 0.0
    %1308 = vmatprep.subr.mxu0 0.0
    %1309 = vmatpush1.msra.mxu0 0.0
    %1310 = vmatprep.mubr.f32.mxu0 0.0
    %1311 = vmatmul.mubr.f32.gmra.mrb[0].mxu0 %v1241
    %v1312 = vpop.f32.mrb[0].mxu0
    %v1313 = vadd.f32 %v206, %v1312
    %v1314 = vpop.f32.mrb[0].mxu0
    %1315 = vmatprep.mubr.f32.mxu0 0.0
    %1316 = vmatmul.mubr.f32.gmra.mrb[0].mxu0 %v1244
    %v1317 = vpop.f32.mrb[0].mxu0
    %v1318 = vadd.f32 %v206, %v1317
    %v1319 = vpop.f32.mrb[0].mxu0
    %1320 = vdwg.mxu0
    %1321 = vst.msk [vmem:[#allocation2] sm:$0xff] %vm196, %v1313
    %1322 = vst.msk [vmem:[#allocation2 + $0x8] sm:$0x3f] %vm407, %v1318
    %1323 = vst.msk [vmem:[#allocation2 + $0xe] sm:$0x1] %vm409, 0.0
    %v1324 = vld [vmem:[#allocation2] ss:$2 sm:$0x7f]
    %v1325 = vld [vmem:[%s412] ss:$2 sm:$0x7f]
    %v1326 = vld [vmem:[%s414] ss:$2 sm:$0x7f]
    %v1327 = vmax.f32 %v1324, %v1325
    %v1328 = vmax.f32 %v1327, %v1326
    %v1329 = vmax.f32 %v1328, 0.0
    %v1331 = vrot.slane %v1329, 7
    %v1333 = vsel %vm168, 0.0, %v1331
    %v1335 = vrot.slane %v1333, 1
    %1336 = vrot.lane.b32.xlu0 %v1335, 8
    %v1337 = vpop.permute.xlu0 %1336
    %v1339 = vrot.slane %v1333, 2
    %v1340 = vsel %vm60, %v1339, %v430
    %1341 = vrot.lane.b32.xlu0 %v1340, 16
    %v1342 = vpop.permute.xlu0 %1341
    %v1344 = vsel %vm196, %v1333, %v1337
    %v1345 = vsel %vm199, %v1344, %v1342
    %v1347 = vsel %vm208, %v1345, 0
    %1349 = vmatprep.subr.mxu0 0.0
    %1350 = vmatpush1.msra.mxu0 %v39
    %1351 = vmatprep.subr.mxu0 0.0
    %1352 = vmatpush1.msra.mxu0 %v40
    %1353 = vmatprep.subr.mxu0 0.0
    %1354 = vmatpush1.msra.mxu0 %v41
    %1355 = vmatprep.subr.mxu0 0.0
    %1356 = vmatpush1.msra.mxu0 0.0
    %1357 = vmatprep.subr.mxu0 0.0
    %1358 = vmatpush1.msra.mxu0 0.0
    %1359 = vmatprep.subr.mxu0 0.0
    %1360 = vmatpush1.msra.mxu0 0.0
    %1361 = vmatprep.subr.mxu0 0.0
    %1362 = vmatpush1.msra.mxu0 0.0
    %1363 = vmatprep.subr.mxu0 0.0
    %1364 = vmatpush1.msra.mxu0 0.0
    %1365 = vmatprep.subr.mxu0 0.0
    %1366 = vmatpush1.msra.mxu0 0.0
    %1367 = vmatprep.subr.mxu0 0.0
    %1368 = vmatpush1.msra.mxu0 0.0
    %1369 = vmatprep.subr.mxu0 0.0
    %1370 = vmatpush1.msra.mxu0 0.0
    %1371 = vmatprep.subr.mxu0 0.0
    %1372 = vmatpush1.msra.mxu0 0.0
    %1373 = vmatprep.subr.mxu0 0.0
    %1374 = vmatpush1.msra.mxu0 0.0
    %1375 = vmatprep.subr.mxu0 0.0
    %1376 = vmatpush1.msra.mxu0 0.0
    %1377 = vmatprep.subr.mxu0 0.0
    %1378 = vmatpush1.msra.mxu0 0.0
    %1379 = vmatprep.subr.mxu0 0.0
    %1380 = vmatpush1.msra.mxu0 0.0
    %1381 = vmatprep.subr.mxu0 0.0
    %1382 = vmatpush1.msra.mxu0 0.0
    %1383 = vmatprep.subr.mxu0 0.0
    %1384 = vmatpush1.msra.mxu0 0.0
    %1385 = vmatprep.subr.mxu0 0.0
    %1386 = vmatpush1.msra.mxu0 0.0
    %1387 = vmatprep.subr.mxu0 0.0
    %1388 = vmatpush1.msra.mxu0 0.0
    %1389 = vmatprep.subr.mxu0 0.0
    %1390 = vmatpush1.msra.mxu0 0.0
    %1391 = vmatprep.subr.mxu0 0.0
    %1392 = vmatpush1.msra.mxu0 0.0
    %1393 = vmatprep.subr.mxu0 0.0
    %1394 = vmatpush1.msra.mxu0 0.0
    %1395 = vmatprep.subr.mxu0 0.0
    %1396 = vmatpush1.msra.mxu0 0.0
    %1397 = vmatprep.subr.mxu0 0.0
    %1398 = vmatpush1.msra.mxu0 0.0
    %1399 = vmatprep.subr.mxu0 0.0
    %1400 = vmatpush1.msra.mxu0 0.0
    %1401 = vmatprep.subr.mxu0 0.0
    %1402 = vmatpush1.msra.mxu0 0.0
    %1403 = vmatprep.subr.mxu0 0.0
    %1404 = vmatpush1.msra.mxu0 0.0
    %1405 = vmatprep.subr.mxu0 0.0
    %1406 = vmatpush1.msra.mxu0 0.0
    %1407 = vmatprep.subr.mxu0 0.0
    %1408 = vmatpush1.msra.mxu0 0.0
    %1409 = vmatprep.subr.mxu0 0.0
    %1410 = vmatpush1.msra.mxu0 0.0
    %1411 = vmatprep.subr.mxu0 0.0
    %1412 = vmatpush1.msra.mxu0 0.0
    %1413 = vmatprep.mubr.f32.mxu0 0.0
    %1414 = vmatmul.mubr.f32.gmra.mrb[0].mxu0 %v1347
    %v1415 = vpop.f32.mrb[0].mxu0
    %v1416 = vadd.f32 %v206, %v1415
    %v1417 = vpop.f32.mrb[0].mxu0
    %1418 = vdwg.mxu0
    %v1419 = vmax.f32 %v1416, 0.0
    %v1421 = vrot.slane %v1419, 7
    %v1423 = vsel %vm168, 0.0, %v1421
    %v1425 = vrot.slane %v1423, 1
    %1426 = vrot.lane.b32.xlu0 %v1425, 8
    %v1427 = vpop.permute.xlu0 %1426
    %v1429 = vrot.slane %v1423, 2
    %v1430 = vsel %vm60, %v1429, %v430
    %1431 = vrot.lane.b32.xlu0 %v1430, 16
    %v1432 = vpop.permute.xlu0 %1431
    %v1434 = vsel %vm196, %v1423, %v1427
    %v1435 = vsel %vm199, %v1434, %v1432
    %v1437 = vsel %vm208, %v1435, 0
    %1439 = vmatprep.subr.mxu0 0.0
    %1440 = vmatpush1.msra.mxu0 %v39
    %1441 = vmatprep.subr.mxu0 0.0
    %1442 = vmatpush1.msra.mxu0 %v40
    %1443 = vmatprep.subr.mxu0 0.0
    %1444 = vmatpush1.msra.mxu0 %v41
    %1445 = vmatprep.subr.mxu0 0.0
    %1446 = vmatpush1.msra.mxu0 0.0
    %1447 = vmatprep.subr.mxu0 0.0
    %1448 = vmatpush1.msra.mxu0 0.0
    %1449 = vmatprep.subr.mxu0 0.0
    %1450 = vmatpush1.msra.mxu0 0.0
    %1451 = vmatprep.subr.mxu0 0.0
    %1452 = vmatpush1.msra.mxu0 0.0
    %1453 = vmatprep.subr.mxu0 0.0
    %1454 = vmatpush1.msra.mxu0 0.0
    %1455 = vmatprep.subr.mxu0 0.0
    %1456 = vmatpush1.msra.mxu0 0.0
    %1457 = vmatprep.subr.mxu0 0.0
    %1458 = vmatpush1.msra.mxu0 0.0
    %1459 = vmatprep.subr.mxu0 0.0
    %1460 = vmatpush1.msra.mxu0 0.0
    %1461 = vmatprep.subr.mxu0 0.0
    %1462 = vmatpush1.msra.mxu0 0.0
    %1463 = vmatprep.subr.mxu0 0.0
    %1464 = vmatpush1.msra.mxu0 0.0
    %1465 = vmatprep.subr.mxu0 0.0
    %1466 = vmatpush1.msra.mxu0 0.0
    %1467 = vmatprep.subr.mxu0 0.0
    %1468 = vmatpush1.msra.mxu0 0.0
    %1469 = vmatprep.subr.mxu0 0.0
    %1470 = vmatpush1.msra.mxu0 0.0
    %1471 = vmatprep.subr.mxu0 0.0
    %1472 = vmatpush1.msra.mxu0 0.0
    %1473 = vmatprep.subr.mxu0 0.0
    %1474 = vmatpush1.msra.mxu0 0.0
    %1475 = vmatprep.subr.mxu0 0.0
    %1476 = vmatpush1.msra.mxu0 0.0
    %1477 = vmatprep.subr.mxu0 0.0
    %1478 = vmatpush1.msra.mxu0 0.0
    %1479 = vmatprep.subr.mxu0 0.0
    %1480 = vmatpush1.msra.mxu0 0.0
    %1481 = vmatprep.subr.mxu0 0.0
    %1482 = vmatpush1.msra.mxu0 0.0
    %1483 = vmatprep.subr.mxu0 0.0
    %1484 = vmatpush1.msra.mxu0 0.0
    %1485 = vmatprep.subr.mxu0 0.0
    %1486 = vmatpush1.msra.mxu0 0.0
    %1487 = vmatprep.subr.mxu0 0.0
    %1488 = vmatpush1.msra.mxu0 0.0
    %1489 = vmatprep.subr.mxu0 0.0
    %1490 = vmatpush1.msra.mxu0 0.0
    %1491 = vmatprep.subr.mxu0 0.0
    %1492 = vmatpush1.msra.mxu0 0.0
    %1493 = vmatprep.subr.mxu0 0.0
    %1494 = vmatpush1.msra.mxu0 0.0
    %1495 = vmatprep.subr.mxu0 0.0
    %1496 = vmatpush1.msra.mxu0 0.0
    %1497 = vmatprep.subr.mxu0 0.0
    %1498 = vmatpush1.msra.mxu0 0.0
    %1499 = vmatprep.subr.mxu0 0.0
    %1500 = vmatpush1.msra.mxu0 0.0
    %1501 = vmatprep.subr.mxu0 0.0
    %1502 = vmatpush1.msra.mxu0 0.0
    %1503 = vmatprep.mubr.f32.mxu0 0.0
    %1504 = vmatmul.mubr.f32.gmra.mrb[0].mxu0 %v1437
    %v1505 = vpop.f32.mrb[0].mxu0
    %v1506 = vadd.f32 %v206, %v1505
    %v1507 = vpop.f32.mrb[0].mxu0
    %1508 = vdwg.mxu0
    %v1509 = vadd.f32 %v1506, %v1328
    %1510 = vst.msk [vmem:[#allocation2] sm:$0x7f] %vm601, %v1509
    %1511 = vst.msk [vmem:[#allocation2 + $0x7] sm:$0x1] %vm409, 0.0
    %v1512 = vld [vmem:[#allocation2] ss:$2 sm:$0x7]
    %v1513 = vld [vmem:[%s412] ss:$2 sm:$0x7]
    %v1514 = vld [vmem:[%s414] ss:$2 sm:$0x7]
    %v1515 = vmax.f32 %v1512, %v1513
    %v1516 = vmax.f32 %v1515, %v1514
    %v1517 = vmax.f32 %v1516, 0.0
    %v1519 = vrot.slane %v1517, 7
    %v1521 = vsel %vm168, 0.0, %v1519
    %v1522 = vsel %vm614, %v1521, 0.0
    %v1524 = vrot.slane %v1522, 1
    %1525 = vrot.lane.b32.xlu0 %v1524, 8
    %v1526 = vpop.permute.xlu0 %1525
    %v1528 = vrot.slane %v1522, 2
    %1529 = vrot.lane.b32.xlu0 %v1528, 16
    %v1530 = vpop.permute.xlu0 %1529
    %v1532 = vsel %vm196, %v1522, %v1526
    %v1533 = vsel %vm199, %v1532, %v1530
    %v1535 = vsel %vm208, %v1533, 0
    %1537 = vmatprep.subr.mxu0 0.0
    %1538 = vmatpush1.msra.mxu0 %v39
    %1539 = vmatprep.subr.mxu0 0.0
    %1540 = vmatpush1.msra.mxu0 %v40
    %1541 = vmatprep.subr.mxu0 0.0
    %1542 = vmatpush1.msra.mxu0 %v41
    %1543 = vmatprep.subr.mxu0 0.0
    %1544 = vmatpush1.msra.mxu0 0.0
    %1545 = vmatprep.subr.mxu0 0.0
    %1546 = vmatpush1.msra.mxu0 0.0
    %1547 = vmatprep.subr.mxu0 0.0
    %1548 = vmatpush1.msra.mxu0 0.0
    %1549 = vmatprep.subr.mxu0 0.0
    %1550 = vmatpush1.msra.mxu0 0.0
    %1551 = vmatprep.subr.mxu0 0.0
    %1552 = vmatpush1.msra.mxu0 0.0
    %1553 = vmatprep.subr.mxu0 0.0
    %1554 = vmatpush1.msra.mxu0 0.0
    %1555 = vmatprep.subr.mxu0 0.0
    %1556 = vmatpush1.msra.mxu0 0.0
    %1557 = vmatprep.subr.mxu0 0.0
    %1558 = vmatpush1.msra.mxu0 0.0
    %1559 = vmatprep.subr.mxu0 0.0
    %1560 = vmatpush1.msra.mxu0 0.0
    %1561 = vmatprep.subr.mxu0 0.0
    %1562 = vmatpush1.msra.mxu0 0.0
    %1563 = vmatprep.subr.mxu0 0.0
    %1564 = vmatpush1.msra.mxu0 0.0
    %1565 = vmatprep.subr.mxu0 0.0
    %1566 = vmatpush1.msra.mxu0 0.0
    %1567 = vmatprep.subr.mxu0 0.0
    %1568 = vmatpush1.msra.mxu0 0.0
    %1569 = vmatprep.subr.mxu0 0.0
    %1570 = vmatpush1.msra.mxu0 0.0
    %1571 = vmatprep.subr.mxu0 0.0
    %1572 = vmatpush1.msra.mxu0 0.0
    %1573 = vmatprep.subr.mxu0 0.0
    %1574 = vmatpush1.msra.mxu0 0.0
    %1575 = vmatprep.subr.mxu0 0.0
    %1576 = vmatpush1.msra.mxu0 0.0
    %1577 = vmatprep.subr.mxu0 0.0
    %1578 = vmatpush1.msra.mxu0 0.0
    %1579 = vmatprep.subr.mxu0 0.0
    %1580 = vmatpush1.msra.mxu0 0.0
    %1581 = vmatprep.subr.mxu0 0.0
    %1582 = vmatpush1.msra.mxu0 0.0
    %1583 = vmatprep.subr.mxu0 0.0
    %1584 = vmatpush1.msra.mxu0 0.0
    %1585 = vmatprep.subr.mxu0 0.0
    %1586 = vmatpush1.msra.mxu0 0.0
    %1587 = vmatprep.subr.mxu0 0.0
    %1588 = vmatpush1.msra.mxu0 0.0
    %1589 = vmatprep.subr.mxu0 0.0
    %1590 = vmatpush1.msra.mxu0 0.0
    %1591 = vmatprep.subr.mxu0 0.0
    %1592 = vmatpush1.msra.mxu0 0.0
    %1593 = vmatprep.subr.mxu0 0.0
    %1594 = vmatpush1.msra.mxu0 0.0
    %1595 = vmatprep.subr.mxu0 0.0
    %1596 = vmatpush1.msra.mxu0 0.0
    %1597 = vmatprep.subr.mxu0 0.0
    %1598 = vmatpush1.msra.mxu0 0.0
    %1599 = vmatprep.subr.mxu0 0.0
    %1600 = vmatpush1.msra.mxu0 0.0
    %1601 = vmatprep.mubr.f32.mxu0 0.0
    %1602 = vmatmul.mubr.f32.gmra.mrb[0].mxu0 %v1535
    %v1603 = vpop.f32.mrb[0].mxu0
    %v1604 = vadd.f32 %v206, %v1603
    %v1605 = vpop.f32.mrb[0].mxu0
    %1606 = vdwg.mxu0
    %v1607 = vmax.f32 %v1604, 0.0
    %v1609 = vrot.slane %v1607, 7
    %v1611 = vsel %vm168, 0.0, %v1609
    %v1612 = vsel %vm614, %v1611, 0.0
    %v1614 = vrot.slane %v1612, 1
    %1615 = vrot.lane.b32.xlu0 %v1614, 8
    %v1616 = vpop.permute.xlu0 %1615
    %v1618 = vrot.slane %v1612, 2
    %1619 = vrot.lane.b32.xlu0 %v1618, 16
    %v1620 = vpop.permute.xlu0 %1619
    %v1622 = vsel %vm196, %v1612, %v1616
    %v1623 = vsel %vm199, %v1622, %v1620
    %v1625 = vsel %vm208, %v1623, 0
    %1627 = vmatprep.subr.mxu0 0.0
    %1628 = vmatpush1.msra.mxu0 %v39
    %1629 = vmatprep.subr.mxu0 0.0
    %1630 = vmatpush1.msra.mxu0 %v40
    %1631 = vmatprep.subr.mxu0 0.0
    %1632 = vmatpush1.msra.mxu0 %v41
    %1633 = vmatprep.subr.mxu0 0.0
    %1634 = vmatpush1.msra.mxu0 0.0
    %1635 = vmatprep.subr.mxu0 0.0
    %1636 = vmatpush1.msra.mxu0 0.0
    %1637 = vmatprep.subr.mxu0 0.0
    %1638 = vmatpush1.msra.mxu0 0.0
    %1639 = vmatprep.subr.mxu0 0.0
    %1640 = vmatpush1.msra.mxu0 0.0
    %1641 = vmatprep.subr.mxu0 0.0
    %1642 = vmatpush1.msra.mxu0 0.0
    %1643 = vmatprep.subr.mxu0 0.0
    %1644 = vmatpush1.msra.mxu0 0.0
    %1645 = vmatprep.subr.mxu0 0.0
    %1646 = vmatpush1.msra.mxu0 0.0
    %1647 = vmatprep.subr.mxu0 0.0
    %1648 = vmatpush1.msra.mxu0 0.0
    %1649 = vmatprep.subr.mxu0 0.0
    %1650 = vmatpush1.msra.mxu0 0.0
    %1651 = vmatprep.subr.mxu0 0.0
    %1652 = vmatpush1.msra.mxu0 0.0
    %1653 = vmatprep.subr.mxu0 0.0
    %1654 = vmatpush1.msra.mxu0 0.0
    %1655 = vmatprep.subr.mxu0 0.0
    %1656 = vmatpush1.msra.mxu0 0.0
    %1657 = vmatprep.subr.mxu0 0.0
    %1658 = vmatpush1.msra.mxu0 0.0
    %1659 = vmatprep.subr.mxu0 0.0
    %1660 = vmatpush1.msra.mxu0 0.0
    %1661 = vmatprep.subr.mxu0 0.0
    %1662 = vmatpush1.msra.mxu0 0.0
    %1663 = vmatprep.subr.mxu0 0.0
    %1664 = vmatpush1.msra.mxu0 0.0
    %1665 = vmatprep.subr.mxu0 0.0
    %1666 = vmatpush1.msra.mxu0 0.0
    %1667 = vmatprep.subr.mxu0 0.0
    %1668 = vmatpush1.msra.mxu0 0.0
    %1669 = vmatprep.subr.mxu0 0.0
    %1670 = vmatpush1.msra.mxu0 0.0
    %1671 = vmatprep.subr.mxu0 0.0
    %1672 = vmatpush1.msra.mxu0 0.0
    %1673 = vmatprep.subr.mxu0 0.0
    %1674 = vmatpush1.msra.mxu0 0.0
    %1675 = vmatprep.subr.mxu0 0.0
    %1676 = vmatpush1.msra.mxu0 0.0
    %1677 = vmatprep.subr.mxu0 0.0
    %1678 = vmatpush1.msra.mxu0 0.0
    %1679 = vmatprep.subr.mxu0 0.0
    %1680 = vmatpush1.msra.mxu0 0.0
    %1681 = vmatprep.subr.mxu0 0.0
    %1682 = vmatpush1.msra.mxu0 0.0
    %1683 = vmatprep.subr.mxu0 0.0
    %1684 = vmatpush1.msra.mxu0 0.0
    %1685 = vmatprep.subr.mxu0 0.0
    %1686 = vmatpush1.msra.mxu0 0.0
    %1687 = vmatprep.subr.mxu0 0.0
    %1688 = vmatpush1.msra.mxu0 0.0
    %1689 = vmatprep.subr.mxu0 0.0
    %1690 = vmatpush1.msra.mxu0 0.0
    %1691 = vmatprep.mubr.f32.mxu0 0.0
    %1692 = vmatmul.mubr.f32.gmra.mrb[0].mxu0 %v1625
    %v1693 = vpop.f32.mrb[0].mxu0
    %v1694 = vadd.f32 %v206, %v1693
    %v1695 = vpop.f32.mrb[0].mxu0
    %1696 = vdwg.mxu0
    %v1697 = vadd.f32 %v1694, %v1516
    %1698 = vst.msk [vmem:[#allocation2] sm:$0x7] %vm791, %v1697
    %1699 = vst.msk [vmem:[#allocation2 + $0x3] sm:$0x1] %vm409, 0.0
    %v1700 = vld [vmem:[#allocation2] ss:$2 sm:$0x1]
    %v1701 = vld [vmem:[%s412] ss:$2 sm:$0x1]
    %v1702 = vld [vmem:[%s414] ss:$2 sm:$0x1]
    %v1703 = vmax.f32 %v1700, %v1701
    %v1704 = vmax.f32 %v1703, %v1702
    %v1705 = vmax.f32 %v1704, 0.0
    %v1707 = vrot.slane %v1705, 7
    %v1709 = vsel %vm168, 0.0, %v1707
    %v1710 = vsel %vm804, %v1709, 0.0
    %v1712 = vrot.slane %v1710, 1
    %1713 = vrot.lane.b32.xlu0 %v1712, 8
    %v1714 = vpop.permute.xlu0 %1713
    %v1716 = vrot.slane %v1710, 2
    %1717 = vrot.lane.b32.xlu0 %v1716, 16
    %v1718 = vpop.permute.xlu0 %1717
    %v1720 = vsel %vm196, %v1710, %v1714
    %v1721 = vsel %vm199, %v1720, %v1718
    %v1723 = vsel %vm208, %v1721, 0
    %1725 = vmatprep.subr.mxu0 0.0
    %1726 = vmatpush1.msra.mxu0 %v39
    %1727 = vmatprep.subr.mxu0 0.0
    %1728 = vmatpush1.msra.mxu0 %v40
    %1729 = vmatprep.subr.mxu0 0.0
    %1730 = vmatpush1.msra.mxu0 %v41
    %1731 = vmatprep.subr.mxu0 0.0
    %1732 = vmatpush1.msra.mxu0 0.0
    %1733 = vmatprep.subr.mxu0 0.0
    %1734 = vmatpush1.msra.mxu0 0.0
    %1735 = vmatprep.subr.mxu0 0.0
    %1736 = vmatpush1.msra.mxu0 0.0
    %1737 = vmatprep.subr.mxu0 0.0
    %1738 = vmatpush1.msra.mxu0 0.0
    %1739 = vmatprep.subr.mxu0 0.0
    %1740 = vmatpush1.msra.mxu0 0.0
    %1741 = vmatprep.subr.mxu0 0.0
    %1742 = vmatpush1.msra.mxu0 0.0
    %1743 = vmatprep.subr.mxu0 0.0
    %1744 = vmatpush1.msra.mxu0 0.0
    %1745 = vmatprep.subr.mxu0 0.0
    %1746 = vmatpush1.msra.mxu0 0.0
    %1747 = vmatprep.subr.mxu0 0.0
    %1748 = vmatpush1.msra.mxu0 0.0
    %1749 = vmatprep.subr.mxu0 0.0
    %1750 = vmatpush1.msra.mxu0 0.0
    %1751 = vmatprep.subr.mxu0 0.0
    %1752 = vmatpush1.msra.mxu0 0.0
    %1753 = vmatprep.subr.mxu0 0.0
    %1754 = vmatpush1.msra.mxu0 0.0
    %1755 = vmatprep.subr.mxu0 0.0
    %1756 = vmatpush1.msra.mxu0 0.0
    %1757 = vmatprep.subr.mxu0 0.0
    %1758 = vmatpush1.msra.mxu0 0.0
    %1759 = vmatprep.subr.mxu0 0.0
    %1760 = vmatpush1.msra.mxu0 0.0
    %1761 = vmatprep.subr.mxu0 0.0
    %1762 = vmatpush1.msra.mxu0 0.0
    %1763 = vmatprep.subr.mxu0 0.0
    %1764 = vmatpush1.msra.mxu0 0.0
    %1765 = vmatprep.subr.mxu0 0.0
    %1766 = vmatpush1.msra.mxu0 0.0
    %1767 = vmatprep.subr.mxu0 0.0
    %1768 = vmatpush1.msra.mxu0 0.0
    %1769 = vmatprep.subr.mxu0 0.0
    %1770 = vmatpush1.msra.mxu0 0.0
    %1771 = vmatprep.subr.mxu0 0.0
    %1772 = vmatpush1.msra.mxu0 0.0
    %1773 = vmatprep.subr.mxu0 0.0
    %1774 = vmatpush1.msra.mxu0 0.0
    %1775 = vmatprep.subr.mxu0 0.0
    %1776 = vmatpush1.msra.mxu0 0.0
    %1777 = vmatprep.subr.mxu0 0.0
    %1778 = vmatpush1.msra.mxu0 0.0
    %1779 = vmatprep.subr.mxu0 0.0
    %1780 = vmatpush1.msra.mxu0 0.0
    %1781 = vmatprep.subr.mxu0 0.0
    %1782 = vmatpush1.msra.mxu0 0.0
    %1783 = vmatprep.subr.mxu0 0.0
    %1784 = vmatpush1.msra.mxu0 0.0
    %1785 = vmatprep.subr.mxu0 0.0
    %1786 = vmatpush1.msra.mxu0 0.0
    %1787 = vmatprep.subr.mxu0 0.0
    %1788 = vmatpush1.msra.mxu0 0.0
    %1789 = vmatprep.mubr.f32.mxu0 0.0
    %1790 = vmatmul.mubr.f32.gmra.mrb[0].mxu0 %v1723
    %v1791 = vpop.f32.mrb[0].mxu0
    %v1792 = vadd.f32 %v43, %v1791
    %v1793 = vpop.f32.mrb[0].mxu0
    %1794 = vdwg.mxu0
    %v1795 = vmax.f32 %v1792, 0.0
    %v1797 = vrot.slane %v1795, 7
    %v1799 = vsel %vm168, 0.0, %v1797
    %v1800 = vsel %vm804, %v1799, 0.0
    %v1802 = vrot.slane %v1800, 1
    %1803 = vrot.lane.b32.xlu0 %v1802, 8
    %v1804 = vpop.permute.xlu0 %1803
    %v1806 = vrot.slane %v1800, 2
    %1807 = vrot.lane.b32.xlu0 %v1806, 16
    %v1808 = vpop.permute.xlu0 %1807
    %v1810 = vsel %vm196, %v1800, %v1804
    %v1811 = vsel %vm199, %v1810, %v1808
    %v1813 = vsel %vm208, %v1811, 0
    %1815 = vmatprep.subr.mxu0 0.0
    %1816 = vmatpush1.msra.mxu0 %v39
    %1817 = vmatprep.subr.mxu0 0.0
    %1818 = vmatpush1.msra.mxu0 %v40
    %1819 = vmatprep.subr.mxu0 0.0
    %1820 = vmatpush1.msra.mxu0 %v41
    %1821 = vmatprep.subr.mxu0 0.0
    %1822 = vmatpush1.msra.mxu0 0.0
    %1823 = vmatprep.subr.mxu0 0.0
    %1824 = vmatpush1.msra.mxu0 0.0
    %1825 = vmatprep.subr.mxu0 0.0
    %1826 = vmatpush1.msra.mxu0 0.0
    %1827 = vmatprep.subr.mxu0 0.0
    %1828 = vmatpush1.msra.mxu0 0.0
    %1829 = vmatprep.subr.mxu0 0.0
    %1830 = vmatpush1.msra.mxu0 0.0
    %1831 = vmatprep.subr.mxu0 0.0
    %1832 = vmatpush1.msra.mxu0 0.0
    %1833 = vmatprep.subr.mxu0 0.0
    %1834 = vmatpush1.msra.mxu0 0.0
    %1835 = vmatprep.subr.mxu0 0.0
    %1836 = vmatpush1.msra.mxu0 0.0
    %1837 = vmatprep.subr.mxu0 0.0
    %1838 = vmatpush1.msra.mxu0 0.0
    %1839 = vmatprep.subr.mxu0 0.0
    %1840 = vmatpush1.msra.mxu0 0.0
    %1841 = vmatprep.subr.mxu0 0.0
    %1842 = vmatpush1.msra.mxu0 0.0
    %1843 = vmatprep.subr.mxu0 0.0
    %1844 = vmatpush1.msra.mxu0 0.0
    %1845 = vmatprep.subr.mxu0 0.0
    %1846 = vmatpush1.msra.mxu0 0.0
    %1847 = vmatprep.subr.mxu0 0.0
    %1848 = vmatpush1.msra.mxu0 0.0
    %1849 = vmatprep.subr.mxu0 0.0
    %1850 = vmatpush1.msra.mxu0 0.0
    %1851 = vmatprep.subr.mxu0 0.0
    %1852 = vmatpush1.msra.mxu0 0.0
    %1853 = vmatprep.subr.mxu0 0.0
    %1854 = vmatpush1.msra.mxu0 0.0
    %1855 = vmatprep.subr.mxu0 0.0
    %1856 = vmatpush1.msra.mxu0 0.0
    %1857 = vmatprep.subr.mxu0 0.0
    %1858 = vmatpush1.msra.mxu0 0.0
    %1859 = vmatprep.subr.mxu0 0.0
    %1860 = vmatpush1.msra.mxu0 0.0
    %1861 = vmatprep.subr.mxu0 0.0
    %1862 = vmatpush1.msra.mxu0 0.0
    %1863 = vmatprep.subr.mxu0 0.0
    %1864 = vmatpush1.msra.mxu0 0.0
    %1865 = vmatprep.subr.mxu0 0.0
    %1866 = vmatpush1.msra.mxu0 0.0
    %1867 = vmatprep.subr.mxu0 0.0
    %1868 = vmatpush1.msra.mxu0 0.0
    %1869 = vmatprep.subr.mxu0 0.0
    %1870 = vmatpush1.msra.mxu0 0.0
    %1871 = vmatprep.subr.mxu0 0.0
    %1872 = vmatpush1.msra.mxu0 0.0
    %1873 = vmatprep.subr.mxu0 0.0
    %1874 = vmatpush1.msra.mxu0 0.0
    %1875 = vmatprep.subr.mxu0 0.0
    %1876 = vmatpush1.msra.mxu0 0.0
    %1877 = vmatprep.subr.mxu0 0.0
    %1878 = vmatpush1.msra.mxu0 0.0
    %1879 = vmatprep.mubr.f32.mxu0 0.0
    %1880 = vmatmul.mubr.f32.gmra.mrb[0].mxu0 %v1813
    %v1881 = vpop.f32.mrb[0].mxu0
    %v1882 = vadd.f32 %v43, %v1881
    %v1883 = vpop.f32.mrb[0].mxu0
    %1884 = vdwg.mxu0
    %v1885 = vadd.f32 %v1882, %v1704
    %v1887 = vrot.slane %v1885, 7
    %v1889 = vsel %vm168, %v980, %v1887
    %v1891 = vlaneseq
    %v1892 = vshrl.u32 %v1891, 7
    %v1893 = vsub.s32 0, %v1892
    %v1894 = vrot.slane %v45, %v1893
    %v1897 = vsel %vm196, %v1889, 0
    %1899 = vmatprep.subr.mxu0 0.0
    %1900 = vmatpush1.msra.mxu0 %v44
    %1901 = vmatprep.subr.mxu0 0.0
    %1902 = vmatpush1.msra.mxu0 0.0
    %1903 = vmatprep.subr.mxu0 0.0
    %1904 = vmatpush1.msra.mxu0 0.0
    %1905 = vmatprep.subr.mxu0 0.0
    %1906 = vmatpush1.msra.mxu0 0.0
    %1907 = vmatprep.subr.mxu0 0.0
    %1908 = vmatpush1.msra.mxu0 0.0
    %1909 = vmatprep.subr.mxu0 0.0
    %1910 = vmatpush1.msra.mxu0 0.0
    %1911 = vmatprep.subr.mxu0 0.0
    %1912 = vmatpush1.msra.mxu0 0.0
    %1913 = vmatprep.subr.mxu0 0.0
    %1914 = vmatpush1.msra.mxu0 0.0
    %1915 = vmatprep.subr.mxu0 0.0
    %1916 = vmatpush1.msra.mxu0 0.0
    %1917 = vmatprep.subr.mxu0 0.0
    %1918 = vmatpush1.msra.mxu0 0.0
    %1919 = vmatprep.subr.mxu0 0.0
    %1920 = vmatpush1.msra.mxu0 0.0
    %1921 = vmatprep.subr.mxu0 0.0
    %1922 = vmatpush1.msra.mxu0 0.0
    %1923 = vmatprep.subr.mxu0 0.0
    %1924 = vmatpush1.msra.mxu0 0.0
    %1925 = vmatprep.subr.mxu0 0.0
    %1926 = vmatpush1.msra.mxu0 0.0
    %1927 = vmatprep.subr.mxu0 0.0
    %1928 = vmatpush1.msra.mxu0 0.0
    %1929 = vmatprep.subr.mxu0 0.0
    %1930 = vmatpush1.msra.mxu0 0.0
    %1931 = vmatprep.subr.mxu0 0.0
    %1932 = vmatpush1.msra.mxu0 0.0
    %1933 = vmatprep.subr.mxu0 0.0
    %1934 = vmatpush1.msra.mxu0 0.0
    %1935 = vmatprep.subr.mxu0 0.0
    %1936 = vmatpush1.msra.mxu0 0.0
    %1937 = vmatprep.subr.mxu0 0.0
    %1938 = vmatpush1.msra.mxu0 0.0
    %1939 = vmatprep.subr.mxu0 0.0
    %1940 = vmatpush1.msra.mxu0 0.0
    %1941 = vmatprep.subr.mxu0 0.0
    %1942 = vmatpush1.msra.mxu0 0.0
    %1943 = vmatprep.subr.mxu0 0.0
    %1944 = vmatpush1.msra.mxu0 0.0
    %1945 = vmatprep.subr.mxu0 0.0
    %1946 = vmatpush1.msra.mxu0 0.0
    %1947 = vmatprep.subr.mxu0 0.0
    %1948 = vmatpush1.msra.mxu0 0.0
    %1949 = vmatprep.subr.mxu0 0.0
    %1950 = vmatpush1.msra.mxu0 0.0
    %1951 = vmatprep.subr.mxu0 0.0
    %1952 = vmatpush1.msra.mxu0 0.0
    %1953 = vmatprep.subr.mxu0 0.0
    %1954 = vmatpush1.msra.mxu0 0.0
    %1955 = vmatprep.subr.mxu0 0.0
    %1956 = vmatpush1.msra.mxu0 0.0
    %1957 = vmatprep.subr.mxu0 0.0
    %1958 = vmatpush1.msra.mxu0 0.0
    %1959 = vmatprep.subr.mxu0 0.0
    %1960 = vmatpush1.msra.mxu0 0.0
    %1961 = vmatprep.subr.mxu0 0.0
    %1962 = vmatpush1.msra.mxu0 0.0
    %1963 = vmatprep.mubr.f32.mxu0 0.0
    %1964 = vmatmul.mubr.f32.gmra.mrb[0].mxu0 %v1897
    %v1965 = vpop.f32.mrb[0].mxu0
    %v1966 = vadd.f32 %v1894, %v1965
    %v1967 = vpop.f32.mrb[0].mxu0
    %1968 = vdwg.mxu0
    %vm1969 = vcmask 25600
    %1970 = vst.msk [vmem:[#allocation3] sm:$0x3] %vm1969, %v1966
    // Predicated region
    $region30: #{dpcnn_forward.1} parent=1 // pred_check
      _
    $region31: #{dpcnn_forward.1} parent=1 // pred_check_branch
      %1972 = sbr.rel (0) target = $region33
    $region32: #{dpcnn_forward.1} parent=1 // pred_region
      %s1974 = ssub.s32 32, 32
      %1975 = vsyncadd [#allocation4], %s1974
      %s1977 = sshll.u32 [#allocation3], 4
      %s1978 = int_to_ptr.vmem [resolvable:$true] %s1977
      %1980 = dma.vmem_to_hbm [thread:$0]  %s1978, 32, %s7, [#allocation4]
    $region33: #{dpcnn_forward.1} parent=1 // pred_fallthru
      _
    // Predicated region
    $region34: #{dpcnn_forward.1} parent=1 // pred_check
      _
    $region35: #{dpcnn_forward.1} parent=1 // pred_check_branch
      %1982 = sbr.rel (0) target = $region37
    $region36: #{dpcnn_forward.1} parent=1 // pred_region
      %1983 = dma.done [#allocation4], 32
    $region37: #{dpcnn_forward.1} parent=1 // pred_fallthru
      _
    %1984 = vsyncpa [#allocation4], 1

</llo_original>
